<compile_context>
chip_gen: v5e
topology: v5e:2x2
jax: 0.10.0
libtpu: 0.0.40
codegen_flags: <defaults>
</compile_context>

<pallas_src>
import functools

import jax
import jax.numpy as jnp
from jax.experimental import pallas as pl
from jax.experimental.pallas import tpu as pltpu


def _round_up(x, m):
    return (x + m - 1) // m * m


def _attention_kernel(x_ref, brow_ref, bcol_ref, w1_ref, b1_ref, w2_ref,
                      b2_ref, wm_ref, out_ref, seg_acc, cnt_acc, tg_acc):
    phase = pl.program_id(0)
    t = pl.program_id(1)

    S_pad, D_pad = out_ref.shape
    TN = x_ref.shape[0]

    # ---- fc / residual path for this node tile (recomputed in both phases) ----
    x = x_ref[...]                                                 # [TN, D] f32
    xb = x.astype(jnp.bfloat16)
    h = jnp.dot(xb, w1_ref[...], preferred_element_type=jnp.float32) + b1_ref[...]
    h = jnp.maximum(h, 0.0)
    att = jnp.tanh(
        jnp.dot(h.astype(jnp.bfloat16), w2_ref[...],
                preferred_element_type=jnp.float32) + b2_ref[...])
    x2 = att * x + x                                               # [TN, D] f32
    x2b = x2.astype(jnp.bfloat16)

    brow = brow_ref[...]                                           # [1, TN] i32

    # Scatter one-hot [S_pad, TN] built by iota compare (no transpose anywhere).
    seg_iota = jax.lax.broadcasted_iota(jnp.int32, (S_pad, TN), 0)
    seg_mask = seg_iota == brow                                    # bool
    onehot_sn = seg_mask.astype(jnp.bfloat16)                      # MXU operand

    @pl.when(jnp.logical_and(phase == 0, t == 0))
    def _init():
        seg_acc[...] = jnp.zeros_like(seg_acc)
        cnt_acc[...] = jnp.zeros_like(cnt_acc)
        out_ref[...] = jnp.zeros_like(out_ref)

    @pl.when(phase == 0)
    def _accumulate_segments():
        seg_acc[...] += jnp.dot(onehot_sn, x2b,
                                preferred_element_type=jnp.float32)
        cnt_acc[...] += jnp.sum(seg_mask.astype(jnp.float32), axis=1,
                                keepdims=True)

    @pl.when(jnp.logical_and(phase == 1, t == 0))
    def _global_transform():
        counts = jnp.maximum(cnt_acc[...], 1.0)          # guard empty segments
        mean = seg_acc[...] * pl.reciprocal(counts, approx=True)
        tg_acc[...] = jnp.tanh(
            jnp.dot(mean.astype(jnp.bfloat16), wm_ref[...],
                    preferred_element_type=jnp.float32))

    @pl.when(phase == 1)
    def _weighted_output():
        bcol = bcol_ref[...]                                       # [TN, 1] i32
        node_iota = jax.lax.broadcasted_iota(jnp.int32, (TN, S_pad), 1)
        onehot_ns = (node_iota == bcol).astype(jnp.bfloat16)       # [TN, S_pad]
        tg_per_node = jnp.dot(onehot_ns, tg_acc[...].astype(jnp.bfloat16),
                              preferred_element_type=jnp.float32)  # [TN, D]
        coefs = jax.nn.sigmoid(
            jnp.sum(x2 * tg_per_node, axis=1, keepdims=True))      # [TN, 1]
        weighted = (coefs * x2).astype(jnp.bfloat16)
        out_ref[...] += jnp.dot(onehot_sn, weighted,
                                preferred_element_type=jnp.float32)


@functools.partial(jax.jit, static_argnames=("num_graphs", "tile_n"))
def attention_module_forward(x, batch, params, num_graphs, tile_n=256):
    """x: [N, D] f32 node features, batch: [N] int graph-id per node."""
    N, D = x.shape
    red = max(D // 4, 1)
    S = int(num_graphs)

    D_pad = _round_up(D, 128)
    R_pad = _round_up(red, 128)
    S_pad = _round_up(S, 8)
    N_pad = _round_up(N, tile_n)
    nt = N_pad // tile_n

    f32, bf16 = jnp.float32, jnp.bfloat16

    # Pad nodes/features; padded nodes get sentinel graph id == S so they never
    # touch real segments (rows >= S are sliced off below).
    xp = jnp.zeros((N_pad, D_pad), f32).at[:N, :D].set(x.astype(f32))
    bp = jnp.full((N_pad,), S, jnp.int32).at[:N].set(batch.astype(jnp.int32))
    brow = bp.reshape(1, N_pad)
    bcol = bp.reshape(N_pad, 1)

    # Zero-padded, bf16 MXU weights (biases stay f32).
    w1 = jnp.zeros((D_pad, R_pad), bf16).at[:D, :red].set(params["w1"].astype(bf16))
    b1 = jnp.zeros((1, R_pad), f32).at[:, :red].set(params["b1"].astype(f32))
    w2 = jnp.zeros((R_pad, D_pad), bf16).at[:red, :D].set(params["w2"].astype(bf16))
    b2 = jnp.zeros((1, D_pad), f32).at[:, :D].set(params["b2"].astype(f32))
    wm = jnp.zeros((D_pad, D_pad), bf16).at[:D, :D].set(
        params["weight_matrix"].astype(bf16))

    cost = pl.CostEstimate(
        flops=int(2 * 2 * N_pad * D_pad * (2 * R_pad + 2 * S_pad + 1)
                  + 2 * S_pad * D_pad * D_pad),
        transcendentals=int(2 * 2 * N_pad * D_pad + S_pad * D_pad + N_pad),
        bytes_accessed=int(2 * xp.size * 4 + 2 * (brow.size + bcol.size) * 4
                           + (w1.size + w2.size + wm.size) * 2
                           + (b1.size + b2.size) * 4 + S_pad * D_pad * 4),
    )

    out_padded = pl.pallas_call(
        _attention_kernel,
        out_shape=jax.ShapeDtypeStruct((S_pad, D_pad), f32),
        grid_spec=pltpu.PrefetchScalarGridSpec(
            num_scalar_prefetch=0,
            grid=(2, nt),                                  # (phase, node tile)
            in_specs=[
                pl.BlockSpec((tile_n, D_pad), lambda p, t: (t, 0)),   # x
                pl.BlockSpec((1, tile_n), lambda p, t: (0, t)),       # batch row
                pl.BlockSpec((tile_n, 1), lambda p, t: (t, 0)),       # batch col
                pl.BlockSpec((D_pad, R_pad), lambda p, t: (0, 0)),    # w1
                pl.BlockSpec((1, R_pad), lambda p, t: (0, 0)),        # b1
                pl.BlockSpec((R_pad, D_pad), lambda p, t: (0, 0)),    # w2
                pl.BlockSpec((1, D_pad), lambda p, t: (0, 0)),        # b2
                pl.BlockSpec((D_pad, D_pad), lambda p, t: (0, 0)),    # weight_matrix
            ],
            out_specs=pl.BlockSpec((S_pad, D_pad), lambda p, t: (0, 0)),
            scratch_shapes=[
                pltpu.VMEM((S_pad, D_pad), f32),   # segment-sum accumulator
                pltpu.VMEM((S_pad, 1), f32),       # segment counts
                pltpu.VMEM((S_pad, D_pad), f32),   # tanh(mean @ W)
            ],
        ),
        compiler_params=pltpu.CompilerParams(
            # Both axes carry cross-step accumulator dependences -> arbitrary.
            dimension_semantics=("arbitrary", "arbitrary"),
            vmem_limit_bytes=32 * 1024 * 1024,
        ),
        cost_estimate=cost,
    )(xp, brow, bcol, w1, b1, w2, b2, wm)

    return out_padded[:S, :D]


def init_params(key, dim):
    red = max(dim // 4, 1)
    k1, k2, k3, k4, k5 = jax.random.split(key, 5)

    def xavier(k, fan_in, fan_out, shape):
        lim = (6.0 / (fan_in + fan_out)) ** 0.5
        return jax.random.uniform(k, shape, jnp.float32, -lim, lim)

    return {
        "w1": xavier(k1, dim, red, (dim, red)),
        "b1": xavier(k2, 1, red, (1, red)),
        "w2": xavier(k3, red, dim, (red, dim)),
        "b2": xavier(k4, 1, dim, (1, dim)),
        "weight_matrix": xavier(k5, dim, dim, (dim, dim)),
    }


def reference_forward(x, batch, params, num_graphs):
    """Pure-JAX reference mirroring the kernel's bf16 MXU operands."""
    def q(a):  # bf16 quantization of matmul operands (f32 accumulate)
        return a.astype(jnp.bfloat16).astype(jnp.float32)

    h = jnp.maximum(q(x) @ q(params["w1"]) + params["b1"], 0.0)
    att = jnp.tanh(q(h) @ q(params["w2"]) + params["b2"])
    x2 = att * x + x
    seg_sum = jax.ops.segment_sum(q(x2), batch, num_segments=num_graphs)
    counts = jax.ops.segment_sum(jnp.ones((x.shape[0],), jnp.float32), batch,
                                 num_segments=num_graphs)
    mean = seg_sum / jnp.maximum(counts[:, None], 1.0)
    tg = jnp.tanh(q(mean) @ q(params["weight_matrix"]))
    coefs = jax.nn.sigmoid(jnp.sum(x2 * q(tg)[batch], axis=1))
    weighted = coefs[:, None] * x2
    return jax.ops.segment_sum(q(weighted), batch, num_segments=num_graphs)


if __name__ == "__main__":
    key = jax.random.PRNGKey(0)
    kx, kb, kp = jax.random.split(key, 3)

    N, D, S = 300, 32, 3            # spans two 256-row node tiles
    x = jax.random.normal(kx, (N, D), jnp.float32)
    batch = jax.random.randint(kb, (N,), 0, S, jnp.int32)   # unsorted graph ids
    params = init_params(kp, D)

    out = attention_module_forward(x, batch, params, S)
    out = jax.block_until_ready(out)

    ref = reference_forward(x, batch, params, S)
    assert out.shape == (S, D)
    assert bool(jnp.all(jnp.isfinite(out)))
    assert jnp.allclose(out, ref, atol=5e-2, rtol=5e-2), "mismatch vs reference"

    print("KERNEL_OK")
</pallas_src>

<mosaic_0001>
module attributes {stable_mosaic.version = 11 : i64} {
  func.func @_attention_kernel(%arg0: i32, %arg1: i32, %arg2: memref<256x128xf32, #tpu.memory_space<vmem>>, %arg3: memref<1x256xi32, #tpu.memory_space<vmem>>, %arg4: memref<256x1xi32, #tpu.memory_space<vmem>>, %arg5: memref<128x128xbf16, #tpu.memory_space<vmem>>, %arg6: memref<1x128xf32, #tpu.memory_space<vmem>>, %arg7: memref<128x128xbf16, #tpu.memory_space<vmem>>, %arg8: memref<1x128xf32, #tpu.memory_space<vmem>>, %arg9: memref<128x128xbf16, #tpu.memory_space<vmem>>, %arg10: memref<8x128xf32, #tpu.memory_space<vmem>>, %arg11: memref<8x128xf32, #tpu.memory_space<vmem>>, %arg12: memref<8x1xf32, #tpu.memory_space<vmem>>, %arg13: memref<8x128xf32, #tpu.memory_space<vmem>>) attributes {dimension_semantics = [#tpu.dimension_semantics<arbitrary>, #tpu.dimension_semantics<arbitrary>], iteration_bounds = array<i64: 2, 2>, scalar_prefetch = 0 : i64, scratch_operands = 3 : i64, tpu.core_type = #tpu.core_type<tc>, window_params = [{transform_indices = @transform_0, window_bounds = array<i64: 256, 128>}, {transform_indices = @transform_1, window_bounds = array<i64: 1, 256>}, {transform_indices = @transform_2, window_bounds = array<i64: 256, 1>}, {pipeline_mode = #tpu.pipeline_mode<synchronous>, transform_indices = @transform_3, window_bounds = array<i64: 128, 128>}, {pipeline_mode = #tpu.pipeline_mode<synchronous>, transform_indices = @transform_4, window_bounds = array<i64: 1, 128>}, {pipeline_mode = #tpu.pipeline_mode<synchronous>, transform_indices = @transform_5, window_bounds = array<i64: 128, 128>}, {pipeline_mode = #tpu.pipeline_mode<synchronous>, transform_indices = @transform_6, window_bounds = array<i64: 1, 128>}, {pipeline_mode = #tpu.pipeline_mode<synchronous>, transform_indices = @transform_7, window_bounds = array<i64: 128, 128>}, {pipeline_mode = #tpu.pipeline_mode<synchronous>, transform_indices = @transform_8, window_bounds = array<i64: 8, 128>}]} {
    %c0 = arith.constant 0 : index
    %c0_0 = arith.constant 0 : index
    %0 = vector.load %arg2[%c0, %c0_0] : memref<256x128xf32, #tpu.memory_space<vmem>>, vector<256x128xf32>
    %1 = arith.truncf %0 : vector<256x128xf32> to vector<256x128xbf16>
    %c0_1 = arith.constant 0 : index
    %c0_2 = arith.constant 0 : index
    %2 = vector.load %arg5[%c0_1, %c0_2] : memref<128x128xbf16, #tpu.memory_space<vmem>>, vector<128x128xbf16>
    %cst = arith.constant dense<0.000000e+00> : vector<256x128xf32>
    %3 = tpu.matmul %1, %2, %cst {dimension_numbers = #tpu.dot_dimension_numbers<[1], [0], [0], [1], [0, 0, 1, 1], [], []>} : vector<256x128xbf16>, vector<128x128xbf16>, vector<256x128xf32> -> vector<256x128xf32>
    %c0_3 = arith.constant 0 : index
    %c0_4 = arith.constant 0 : index
    %4 = vector.load %arg6[%c0_3, %c0_4] : memref<1x128xf32, #tpu.memory_space<vmem>>, vector<1x128xf32>
    %5 = vector.broadcast %4 : vector<1x128xf32> to vector<256x128xf32>
    %6 = arith.addf %3, %5 : vector<256x128xf32>
    %cst_5 = arith.constant 0.000000e+00 : f32
    %7 = vector.broadcast %cst_5 : f32 to vector<256x128xf32>
    %8 = arith.maximumf %6, %7 : vector<256x128xf32>
    %9 = arith.truncf %8 : vector<256x128xf32> to vector<256x128xbf16>
    %c0_6 = arith.constant 0 : index
    %c0_7 = arith.constant 0 : index
    %10 = vector.load %arg7[%c0_6, %c0_7] : memref<128x128xbf16, #tpu.memory_space<vmem>>, vector<128x128xbf16>
    %cst_8 = arith.constant dense<0.000000e+00> : vector<256x128xf32>
    %11 = tpu.matmul %9, %10, %cst_8 {dimension_numbers = #tpu.dot_dimension_numbers<[1], [0], [0], [1], [0, 0, 1, 1], [], []>} : vector<256x128xbf16>, vector<128x128xbf16>, vector<256x128xf32> -> vector<256x128xf32>
    %c0_9 = arith.constant 0 : index
    %c0_10 = arith.constant 0 : index
    %12 = vector.load %arg8[%c0_9, %c0_10] : memref<1x128xf32, #tpu.memory_space<vmem>>, vector<1x128xf32>
    %13 = vector.broadcast %12 : vector<1x128xf32> to vector<256x128xf32>
    %14 = arith.addf %11, %13 : vector<256x128xf32>
    %15 = math.tanh %14 : vector<256x128xf32>
    %16 = arith.mulf %15, %0 : vector<256x128xf32>
    %17 = arith.addf %16, %0 : vector<256x128xf32>
    %18 = arith.truncf %17 : vector<256x128xf32> to vector<256x128xbf16>
    %c0_11 = arith.constant 0 : index
    %c0_12 = arith.constant 0 : index
    %19 = vector.load %arg3[%c0_11, %c0_12] : memref<1x256xi32, #tpu.memory_space<vmem>>, vector<1x256xi32>
    %20 = tpu.iota {dimensions = array<i32: 0>} : vector<8x256xi32>
    %21 = vector.broadcast %19 : vector<1x256xi32> to vector<8x256xi32>
    %22 = arith.cmpi eq, %20, %21 : vector<8x256xi32>
    %23 = arith.extui %22 : vector<8x256xi1> to vector<8x256xi32>
    %24 = arith.sitofp %23 : vector<8x256xi32> to vector<8x256xf32>
    %25 = arith.truncf %24 : vector<8x256xf32> to vector<8x256xbf16>
    %c0_i32 = arith.constant 0 : i32
    %26 = arith.cmpi eq, %arg0, %c0_i32 : i32
    %c0_i32_13 = arith.constant 0 : i32
    %27 = arith.cmpi eq, %arg1, %c0_i32_13 : i32
    %28 = arith.andi %26, %27 : i1
    %29 = arith.extui %28 : i1 to i32
    %c0_i32_14 = arith.constant 0 : i32
    %30 = arith.cmpi ne, %29, %c0_i32_14 : i32
    scf.if %30 {
      %cst_21 = arith.constant 0.000000e+00 : f32
      %42 = vector.broadcast %cst_21 : f32 to vector<8x128xf32>
      %c0_22 = arith.constant 0 : index
      %c0_23 = arith.constant 0 : index
      %43 = vector.load %arg11[%c0_22, %c0_23] : memref<8x128xf32, #tpu.memory_space<vmem>>, vector<8x128xf32>
      tpu.vector_store %arg11[%c0_22, %c0_23], %42 {strides = array<i32>} : memref<8x128xf32, #tpu.memory_space<vmem>>, vector<8x128xf32>,
      %cst_24 = arith.constant 0.000000e+00 : f32
      %44 = vector.broadcast %cst_24 : f32 to vector<8x1xf32>
      %c0_25 = arith.constant 0 : index
      %c0_26 = arith.constant 0 : index
      %45 = vector.load %arg12[%c0_25, %c0_26] : memref<8x1xf32, #tpu.memory_space<vmem>>, vector<8x1xf32>
      tpu.vector_store %arg12[%c0_25, %c0_26], %44 {strides = array<i32>} : memref<8x1xf32, #tpu.memory_space<vmem>>, vector<8x1xf32>,
      %cst_27 = arith.constant 0.000000e+00 : f32
      %46 = vector.broadcast %cst_27 : f32 to vector<8x128xf32>
      %c0_28 = arith.constant 0 : index
      %c0_29 = arith.constant 0 : index
      %47 = vector.load %arg10[%c0_28, %c0_29] : memref<8x128xf32, #tpu.memory_space<vmem>>, vector<8x128xf32>
      tpu.vector_store %arg10[%c0_28, %c0_29], %46 {strides = array<i32>} : memref<8x128xf32, #tpu.memory_space<vmem>>, vector<8x128xf32>,
    } else {
    }
    %c0_i32_15 = arith.constant 0 : i32
    %31 = arith.cmpi eq, %arg0, %c0_i32_15 : i32
    %32 = arith.extui %31 : i1 to i32
    %c0_i32_16 = arith.constant 0 : i32
    %33 = arith.cmpi ne, %32, %c0_i32_16 : i32
    scf.if %33 {
      %c0_21 = arith.constant 0 : index
      %c0_22 = arith.constant 0 : index
      %42 = vector.load %arg11[%c0_21, %c0_22] : memref<8x128xf32, #tpu.memory_space<vmem>>, vector<8x128xf32>
      %cst_23 = arith.constant dense<0.000000e+00> : vector<8x128xf32>
      %43 = tpu.matmul %25, %18, %cst_23 {dimension_numbers = #tpu.dot_dimension_numbers<[1], [0], [0], [1], [0, 0, 1, 1], [], []>} : vector<8x256xbf16>, vector<256x128xbf16>, vector<8x128xf32> -> vector<8x128xf32>
      %44 = arith.addf %42, %43 : vector<8x128xf32>
      %c0_24 = arith.constant 0 : index
      %c0_25 = arith.constant 0 : index
      %45 = vector.load %arg11[%c0_24, %c0_25] : memref<8x128xf32, #tpu.memory_space<vmem>>, vector<8x128xf32>
      tpu.vector_store %arg11[%c0_24, %c0_25], %44 {strides = array<i32>} : memref<8x128xf32, #tpu.memory_space<vmem>>, vector<8x128xf32>,
      %c0_26 = arith.constant 0 : index
      %c0_27 = arith.constant 0 : index
      %46 = vector.load %arg12[%c0_26, %c0_27] : memref<8x1xf32, #tpu.memory_space<vmem>>, vector<8x1xf32>
      %47 = arith.extui %22 : vector<8x256xi1> to vector<8x256xi32>
      %48 = arith.sitofp %47 : vector<8x256xi32> to vector<8x256xf32>
      %cst_28 = arith.constant dense<0.000000e+00> : vector<8xf32>
      %49 = vector.multi_reduction <add>, %48, %cst_28 [1] : vector<8x256xf32> to vector<8xf32>
      %50 = vector.shape_cast %49 : vector<8xf32> to vector<8x1xf32>
      %51 = arith.addf %46, %50 : vector<8x1xf32>
      %c0_29 = arith.constant 0 : index
      %c0_30 = arith.constant 0 : index
      %52 = vector.load %arg12[%c0_29, %c0_30] : memref<8x1xf32, #tpu.memory_space<vmem>>, vector<8x1xf32>
      tpu.vector_store %arg12[%c0_29, %c0_30], %51 {strides = array<i32>} : memref<8x1xf32, #tpu.memory_space<vmem>>, vector<8x1xf32>,
    } else {
    }
    %c1_i32 = arith.constant 1 : i32
    %34 = arith.cmpi eq, %arg0, %c1_i32 : i32
    %c0_i32_17 = arith.constant 0 : i32
    %35 = arith.cmpi eq, %arg1, %c0_i32_17 : i32
    %36 = arith.andi %34, %35 : i1
    %37 = arith.extui %36 : i1 to i32
    %c0_i32_18 = arith.constant 0 : i32
    %38 = arith.cmpi ne, %37, %c0_i32_18 : i32
    scf.if %38 {
      %c0_21 = arith.constant 0 : index
      %c0_22 = arith.constant 0 : index
      %42 = vector.load %arg12[%c0_21, %c0_22] : memref<8x1xf32, #tpu.memory_space<vmem>>, vector<8x1xf32>
      %cst_23 = arith.constant 1.000000e+00 : f32
      %43 = vector.broadcast %cst_23 : f32 to vector<8x1xf32>
      %44 = arith.maximumf %42, %43 : vector<8x1xf32>
      %c0_24 = arith.constant 0 : index
      %c0_25 = arith.constant 0 : index
      %45 = vector.load %arg11[%c0_24, %c0_25] : memref<8x128xf32, #tpu.memory_space<vmem>>, vector<8x128xf32>
      %46 = tpu.reciprocal %44 {approx = true} : vector<8x1xf32> -> vector<8x1xf32>
      %47 = vector.broadcast %46 : vector<8x1xf32> to vector<8x128xf32>
      %48 = arith.mulf %45, %47 : vector<8x128xf32>
      %49 = arith.truncf %48 : vector<8x128xf32> to vector<8x128xbf16>
      %c0_26 = arith.constant 0 : index
      %c0_27 = arith.constant 0 : index
      %50 = vector.load %arg9[%c0_26, %c0_27] : memref<128x128xbf16, #tpu.memory_space<vmem>>, vector<128x128xbf16>
      %cst_28 = arith.constant dense<0.000000e+00> : vector<8x128xf32>
      %51 = tpu.matmul %49, %50, %cst_28 {dimension_numbers = #tpu.dot_dimension_numbers<[1], [0], [0], [1], [0, 0, 1, 1], [], []>} : vector<8x128xbf16>, vector<128x128xbf16>, vector<8x128xf32> -> vector<8x128xf32>
      %52 = math.tanh %51 : vector<8x128xf32>
      %c0_29 = arith.constant 0 : index
      %c0_30 = arith.constant 0 : index
      %53 = vector.load %arg13[%c0_29, %c0_30] : memref<8x128xf32, #tpu.memory_space<vmem>>, vector<8x128xf32>
      tpu.vector_store %arg13[%c0_29, %c0_30], %52 {strides = array<i32>} : memref<8x128xf32, #tpu.memory_space<vmem>>, vector<8x128xf32>,
    } else {
    }
    %c1_i32_19 = arith.constant 1 : i32
    %39 = arith.cmpi eq, %arg0, %c1_i32_19 : i32
    %40 = arith.extui %39 : i1 to i32
    %c0_i32_20 = arith.constant 0 : i32
    %41 = arith.cmpi ne, %40, %c0_i32_20 : i32
    scf.if %41 {
      %c0_21 = arith.constant 0 : index
      %c0_22 = arith.constant 0 : index
      %42 = vector.load %arg4[%c0_21, %c0_22] : memref<256x1xi32, #tpu.memory_space<vmem>>, vector<256x1xi32>
      %43 = tpu.iota {dimensions = array<i32: 1>} : vector<256x8xi32>
      %44 = vector.broadcast %42 : vector<256x1xi32> to vector<256x8xi32>
      %45 = arith.cmpi eq, %43, %44 : vector<256x8xi32>
      %46 = arith.extui %45 : vector<256x8xi1> to vector<256x8xi32>
      %47 = arith.sitofp %46 : vector<256x8xi32> to vector<256x8xf32>
      %48 = arith.truncf %47 : vector<256x8xf32> to vector<256x8xbf16>
      %c0_23 = arith.constant 0 : index
      %c0_24 = arith.constant 0 : index
      %49 = vector.load %arg13[%c0_23, %c0_24] : memref<8x128xf32, #tpu.memory_space<vmem>>, vector<8x128xf32>
      %50 = arith.truncf %49 : vector<8x128xf32> to vector<8x128xbf16>
      %cst_25 = arith.constant dense<0.000000e+00> : vector<256x128xf32>
      %51 = tpu.matmul %48, %50, %cst_25 {dimension_numbers = #tpu.dot_dimension_numbers<[1], [0], [0], [1], [0, 0, 1, 1], [], []>} : vector<256x8xbf16>, vector<8x128xbf16>, vector<256x128xf32> -> vector<256x128xf32>
      %52 = arith.mulf %17, %51 : vector<256x128xf32>
      %cst_26 = arith.constant dense<0.000000e+00> : vector<256xf32>
      %53 = vector.multi_reduction <add>, %52, %cst_26 [1] : vector<256x128xf32> to vector<256xf32>
      %54 = vector.shape_cast %53 : vector<256xf32> to vector<256x1xf32>
      %55 = arith.negf %54 : vector<256x1xf32>
      %56 = math.exp %55 : vector<256x1xf32>
      %cst_27 = arith.constant 1.000000e+00 : f32
      %57 = vector.broadcast %cst_27 : f32 to vector<256x1xf32>
      %58 = arith.addf %57, %56 : vector<256x1xf32>
      %59 = arith.divf %57, %58 : vector<256x1xf32>
      %60 = vector.broadcast %59 : vector<256x1xf32> to vector<256x128xf32>
      %61 = arith.mulf %60, %17 : vector<256x128xf32>
      %62 = arith.truncf %61 : vector<256x128xf32> to vector<256x128xbf16>
      %c0_28 = arith.constant 0 : index
      %c0_29 = arith.constant 0 : index
      %63 = vector.load %arg10[%c0_28, %c0_29] : memref<8x128xf32, #tpu.memory_space<vmem>>, vector<8x128xf32>
      %cst_30 = arith.constant dense<0.000000e+00> : vector<8x128xf32>
      %64 = tpu.matmul %25, %62, %cst_30 {dimension_numbers = #tpu.dot_dimension_numbers<[1], [0], [0], [1], [0, 0, 1, 1], [], []>} : vector<8x256xbf16>, vector<256x128xbf16>, vector<8x128xf32> -> vector<8x128xf32>
      %65 = arith.addf %63, %64 : vector<8x128xf32>
      %c0_31 = arith.constant 0 : index
      %c0_32 = arith.constant 0 : index
      %66 = vector.load %arg10[%c0_31, %c0_32] : memref<8x128xf32, #tpu.memory_space<vmem>>, vector<8x128xf32>
      tpu.vector_store %arg10[%c0_31, %c0_32], %65 {strides = array<i32>} : memref<8x128xf32, #tpu.memory_space<vmem>>, vector<8x128xf32>,
    } else {
    }
    return
  }
  func.func @transform_0(%arg0: i32, %arg1: i32) -> (i32, i32) {
    %c0_i32 = arith.constant 0 : i32
    %c0_i32_0 = arith.constant 0 : i32
    return %arg1, %c0_i32 : i32, i32
  }
  func.func @transform_1(%arg0: i32, %arg1: i32) -> (i32, i32) {
    %c0_i32 = arith.constant 0 : i32
    %c0_i32_0 = arith.constant 0 : i32
    return %c0_i32, %arg1 : i32, i32
  }
  func.func @transform_2(%arg0: i32, %arg1: i32) -> (i32, i32) {
    %c0_i32 = arith.constant 0 : i32
    %c0_i32_0 = arith.constant 0 : i32
    return %arg1, %c0_i32 : i32, i32
  }
  func.func @transform_3(%arg0: i32, %arg1: i32) -> (i32, i32) {
    %c0_i32 = arith.constant 0 : i32
    %c0_i32_0 = arith.constant 0 : i32
    %c0_i32_1 = arith.constant 0 : i32
    return %c0_i32, %c0_i32_0 : i32, i32
  }
  func.func @transform_4(%arg0: i32, %arg1: i32) -> (i32, i32) {
    %c0_i32 = arith.constant 0 : i32
    %c0_i32_0 = arith.constant 0 : i32
    %c0_i32_1 = arith.constant 0 : i32
    return %c0_i32, %c0_i32_0 : i32, i32
  }
  func.func @transform_5(%arg0: i32, %arg1: i32) -> (i32, i32) {
    %c0_i32 = arith.constant 0 : i32
    %c0_i32_0 = arith.constant 0 : i32
    %c0_i32_1 = arith.constant 0 : i32
    return %c0_i32, %c0_i32_0 : i32, i32
  }
  func.func @transform_6(%arg0: i32, %arg1: i32) -> (i32, i32) {
    %c0_i32 = arith.constant 0 : i32
    %c0_i32_0 = arith.constant 0 : i32
    %c0_i32_1 = arith.constant 0 : i32
    return %c0_i32, %c0_i32_0 : i32, i32
  }
  func.func @transform_7(%arg0: i32, %arg1: i32) -> (i32, i32) {
    %c0_i32 = arith.constant 0 : i32
    %c0_i32_0 = arith.constant 0 : i32
    %c0_i32_1 = arith.constant 0 : i32
    return %c0_i32, %c0_i32_0 : i32, i32
  }
  func.func @transform_8(%arg0: i32, %arg1: i32) -> (i32, i32) {
    %c0_i32 = arith.constant 0 : i32
    %c0_i32_0 = arith.constant 0 : i32
    %c0_i32_1 = arith.constant 0 : i32
    return %c0_i32, %c0_i32_0 : i32, i32
  }
}

</mosaic_0001>

<llo_original>
// kernel: attention_module_forward.1
$region0: #{attention_module_forward.1}
  #allocation0 [shape = 'u32[]', space=smem, size = 0x4, offset = 0x4, fixed_abs, tag = 'smem constant byte address 0x4 - core index']
  #allocation1 [shape = 'u32[72,128]{1,0:T(1,128)}', space=vmem, size = 0x9000, scoped, tag = 'internal scratch']
  #allocation2 [shape = 'f32[8,128]{1,0:T(8,128)}', space=vmem, size = 0x1000, scoped, tag = 'scratch operand']
  #allocation3 [shape = 'f32[8,1]{1,0:T(8,128)}', space=vmem, size = 0x1000, scoped, tag = 'scratch operand']
  #allocation4 [shape = 'f32[8,128]{1,0:T(8,128)}', space=vmem, size = 0x1000, scoped, tag = 'scratch operand']
  %s0 = inlined_call_operand.vmem [shape: f32[512,128], index: 0, kind: input, shape index: {}]
  %s1 = inlined_call_operand.vmem [shape: s32[1,512], index: 1, kind: input, shape index: {}]
  %s2 = inlined_call_operand.vmem [shape: s32[512,1], index: 2, kind: input, shape index: {}]
  %s3 = inlined_call_operand.vmem [shape: bf16[128,128], index: 3, kind: input, shape index: {}]
  %s4 = inlined_call_operand.vmem [shape: f32[1,128], index: 4, kind: input, shape index: {}]
  %s5 = inlined_call_operand.vmem [shape: bf16[128,128], index: 5, kind: input, shape index: {}]
  %s6 = inlined_call_operand.vmem [shape: f32[1,128], index: 6, kind: input, shape index: {}]
  %s7 = inlined_call_operand.vmem [shape: bf16[128,128], index: 7, kind: input, shape index: {}]
  %s8 = inlined_call_operand.vmem [shape: f32[8,128], index: 8, kind: output, shape index: {}]
  %s9 = sld [smem:[#allocation0]]
  $region81: #{attention_module_forward.1} parent=0
    _
  %s11 = ssub.s32 1, %s9
  %s12 = scalar_select 0, %s11, %s9
  loop: start=0, step=1, limit=6
  $region2: #{attention_module_forward.1} parent=0 // loop_pre_header
    _
  $region3: #{attention_module_forward.1} parent=0 // loop_header
    %s14 = sphi 0, %s18
    %p15 = scmp.ge.s32.totalorder %s14, 6
    %s21 = sphi 0, %s33
    %s22 = sphi 0, %s29
    %s23 = sphi 0, %s21
    %s24 = sphi 0, %s22
    %s25 = sphi 0, %s23
    %s26 = sphi 0, %s24
    %s36 = sphi 0, %s38
    %s39 = sphi 0, %s36
    %s40 = sphi 0, %s39
    %s56 = sphi 0, %s40
    %s62 = sphi 0, %s64
    %s65 = sphi 0, %s62
    %s66 = sphi 0, %s65
    %s82 = sphi 0, %s66
    %s88 = sphi 0, %s90
    %s91 = sphi 0, %s88
    %s92 = sphi 0, %s91
    %s108 = sphi 0, %s92
    %s112 = sphi 0, %s112
    %s114 = sphi 0, %s112
    %s115 = sphi 0, %s114
    %s129 = sphi 0, %s115
    %s133 = sphi 0, %s133
    %s135 = sphi 0, %s133
    %s136 = sphi 0, %s135
    %s150 = sphi 0, %s136
    %s154 = sphi 0, %s154
    %s156 = sphi 0, %s154
    %s157 = sphi 0, %s156
    %s171 = sphi 0, %s157
    %s175 = sphi 0, %s175
    %s177 = sphi 0, %s175
    %s178 = sphi 0, %s177
    %s192 = sphi 0, %s178
    %s196 = sphi 0, %s196
    %s198 = sphi 0, %s196
    %s199 = sphi 0, %s198
    %s213 = sphi 0, %s199
    %s217 = sphi 0, %s217
    %s219 = sphi 0, %s217
    %s220 = sphi 0, %s219
    %s234 = sphi 0, %s220
  $region4: #{attention_module_forward.1} parent=0 // loop_header_branch
    %17 = sbr.rel (%p15) target = $region8
  $region5: #{attention_module_forward.1} parent=0 // loop_body
    %s19 = ssub.s32 %s14, 1
    %s20 = ssub.s32 %s14, 2
    %s27 = sadd.s32 1, %s22
    %p28 = scmp.ge.s32.totalorder %s27, 2
    %s29 = scalar_select %p28, 0, %s27
    %s30 = sadd.s32 1, %s21
    %s31 = scalar_select %p28, %s30, %s21
    %p32 = scmp.ge.s32.totalorder %s31, 2
    %s33 = scalar_select %p32, 0, %s31
    %s34 = ssub.s32 %s22, %s29
    %p35 = scmp.eq.s32.totalorder %s34, 0
    %s37 = sadd.s32 %s36, 1
    %s38 = scalar_select %p35, %s36, %s37
    %p41 = pneg %p35
    %p42 = scmp.eq.s32.totalorder %s14, 3
    %p43 = por %p41, %p42
    %p44 = scmp.ne.s32.totalorder %s36, %s39
    %p45 = scmp.eq.s32.totalorder %s14, 0
    %p46 = por %p44, %p45
    %p47 = scmp.ne.s32.totalorder %s36, %s39
    %p48 = scmp.eq.s32.totalorder %s19, 3
    %p49 = por %p47, %p48
    %p50 = scmp.ne.s32.totalorder %s39, %s40
    %p51 = scmp.eq.s32.totalorder %s19, 0
    %p52 = por %p50, %p51
    %p53 = scmp.ne.s32.totalorder %s39, %s40
    %p54 = scmp.eq.s32.totalorder %s20, 3
    %p55 = por %p53, %p54
    %p57 = scmp.ne.s32.totalorder %s40, %s56
    %p58 = scmp.eq.s32.totalorder %s20, 0
    %p59 = por %p57, %p58
    %s60 = ssub.s32 %s22, %s29
    %p61 = scmp.eq.s32.totalorder %s60, 0
    %s63 = sadd.s32 %s62, 1
    %s64 = scalar_select %p61, %s62, %s63
    %p67 = pneg %p61
    %p68 = scmp.eq.s32.totalorder %s14, 3
    %p69 = por %p67, %p68
    %p70 = scmp.ne.s32.totalorder %s62, %s65
    %p71 = scmp.eq.s32.totalorder %s14, 0
    %p72 = por %p70, %p71
    %p73 = scmp.ne.s32.totalorder %s62, %s65
    %p74 = scmp.eq.s32.totalorder %s19, 3
    %p75 = por %p73, %p74
    %p76 = scmp.ne.s32.totalorder %s65, %s66
    %p77 = scmp.eq.s32.totalorder %s19, 0
    %p78 = por %p76, %p77
    %p79 = scmp.ne.s32.totalorder %s65, %s66
    %p80 = scmp.eq.s32.totalorder %s20, 3
    %p81 = por %p79, %p80
    %p83 = scmp.ne.s32.totalorder %s66, %s82
    %p84 = scmp.eq.s32.totalorder %s20, 0
    %p85 = por %p83, %p84
    %s86 = ssub.s32 %s22, %s29
    %p87 = scmp.eq.s32.totalorder %s86, 0
    %s89 = sadd.s32 %s88, 1
    %s90 = scalar_select %p87, %s88, %s89
    %p93 = pneg %p87
    %p94 = scmp.eq.s32.totalorder %s14, 3
    %p95 = por %p93, %p94
    %p96 = scmp.ne.s32.totalorder %s88, %s91
    %p97 = scmp.eq.s32.totalorder %s14, 0
    %p98 = por %p96, %p97
    %p99 = scmp.ne.s32.totalorder %s88, %s91
    %p100 = scmp.eq.s32.totalorder %s19, 3
    %p101 = por %p99, %p100
    %p102 = scmp.ne.s32.totalorder %s91, %s92
    %p103 = scmp.eq.s32.totalorder %s19, 0
    %p104 = por %p102, %p103
    %p105 = scmp.ne.s32.totalorder %s91, %s92
    %p106 = scmp.eq.s32.totalorder %s20, 3
    %p107 = por %p105, %p106
    %p109 = scmp.ne.s32.totalorder %s92, %s108
    %p110 = scmp.eq.s32.totalorder %s20, 0
    %p111 = por %p109, %p110
    %s113 = sadd.s32 %s112, 1
    %p116 = scmp.eq.s32.totalorder %s14, 3
    %p117 = scmp.ne.s32.totalorder %s112, %s114
    %p118 = scmp.eq.s32.totalorder %s14, 0
    %p119 = por %p117, %p118
    %p120 = scmp.ne.s32.totalorder %s112, %s114
    %p121 = scmp.eq.s32.totalorder %s19, 3
    %p122 = por %p120, %p121
    %p123 = scmp.ne.s32.totalorder %s114, %s115
    %p124 = scmp.eq.s32.totalorder %s19, 0
    %p125 = por %p123, %p124
    %p126 = scmp.ne.s32.totalorder %s114, %s115
    %p127 = scmp.eq.s32.totalorder %s20, 3
    %p128 = por %p126, %p127
    %p130 = scmp.ne.s32.totalorder %s115, %s129
    %p131 = scmp.eq.s32.totalorder %s20, 0
    %p132 = por %p130, %p131
    %s134 = sadd.s32 %s133, 1
    %p137 = scmp.eq.s32.totalorder %s14, 3
    %p138 = scmp.ne.s32.totalorder %s133, %s135
    %p139 = scmp.eq.s32.totalorder %s14, 0
    %p140 = por %p138, %p139
    %p141 = scmp.ne.s32.totalorder %s133, %s135
    %p142 = scmp.eq.s32.totalorder %s19, 3
    %p143 = por %p141, %p142
    %p144 = scmp.ne.s32.totalorder %s135, %s136
    %p145 = scmp.eq.s32.totalorder %s19, 0
    %p146 = por %p144, %p145
    %p147 = scmp.ne.s32.totalorder %s135, %s136
    %p148 = scmp.eq.s32.totalorder %s20, 3
    %p149 = por %p147, %p148
    %p151 = scmp.ne.s32.totalorder %s136, %s150
    %p152 = scmp.eq.s32.totalorder %s20, 0
    %p153 = por %p151, %p152
    %s155 = sadd.s32 %s154, 1
    %p158 = scmp.eq.s32.totalorder %s14, 3
    %p159 = scmp.ne.s32.totalorder %s154, %s156
    %p160 = scmp.eq.s32.totalorder %s14, 0
    %p161 = por %p159, %p160
    %p162 = scmp.ne.s32.totalorder %s154, %s156
    %p163 = scmp.eq.s32.totalorder %s19, 3
    %p164 = por %p162, %p163
    %p165 = scmp.ne.s32.totalorder %s156, %s157
    %p166 = scmp.eq.s32.totalorder %s19, 0
    %p167 = por %p165, %p166
    %p168 = scmp.ne.s32.totalorder %s156, %s157
    %p169 = scmp.eq.s32.totalorder %s20, 3
    %p170 = por %p168, %p169
    %p172 = scmp.ne.s32.totalorder %s157, %s171
    %p173 = scmp.eq.s32.totalorder %s20, 0
    %p174 = por %p172, %p173
    %s176 = sadd.s32 %s175, 1
    %p179 = scmp.eq.s32.totalorder %s14, 3
    %p180 = scmp.ne.s32.totalorder %s175, %s177
    %p181 = scmp.eq.s32.totalorder %s14, 0
    %p182 = por %p180, %p181
    %p183 = scmp.ne.s32.totalorder %s175, %s177
    %p184 = scmp.eq.s32.totalorder %s19, 3
    %p185 = por %p183, %p184
    %p186 = scmp.ne.s32.totalorder %s177, %s178
    %p187 = scmp.eq.s32.totalorder %s19, 0
    %p188 = por %p186, %p187
    %p189 = scmp.ne.s32.totalorder %s177, %s178
    %p190 = scmp.eq.s32.totalorder %s20, 3
    %p191 = por %p189, %p190
    %p193 = scmp.ne.s32.totalorder %s178, %s192
    %p194 = scmp.eq.s32.totalorder %s20, 0
    %p195 = por %p193, %p194
    %s197 = sadd.s32 %s196, 1
    %p200 = scmp.eq.s32.totalorder %s14, 3
    %p201 = scmp.ne.s32.totalorder %s196, %s198
    %p202 = scmp.eq.s32.totalorder %s14, 0
    %p203 = por %p201, %p202
    %p204 = scmp.ne.s32.totalorder %s196, %s198
    %p205 = scmp.eq.s32.totalorder %s19, 3
    %p206 = por %p204, %p205
    %p207 = scmp.ne.s32.totalorder %s198, %s199
    %p208 = scmp.eq.s32.totalorder %s19, 0
    %p209 = por %p207, %p208
    %p210 = scmp.ne.s32.totalorder %s198, %s199
    %p211 = scmp.eq.s32.totalorder %s20, 3
    %p212 = por %p210, %p211
    %p214 = scmp.ne.s32.totalorder %s199, %s213
    %p215 = scmp.eq.s32.totalorder %s20, 0
    %p216 = por %p214, %p215
    %s218 = sadd.s32 %s217, 1
    %p221 = scmp.eq.s32.totalorder %s14, 3
    %p222 = scmp.ne.s32.totalorder %s217, %s219
    %p223 = scmp.eq.s32.totalorder %s14, 0
    %p224 = por %p222, %p223
    %p225 = scmp.ne.s32.totalorder %s217, %s219
    %p226 = scmp.eq.s32.totalorder %s19, 3
    %p227 = por %p225, %p226
    %p228 = scmp.ne.s32.totalorder %s219, %s220
    %p229 = scmp.eq.s32.totalorder %s19, 0
    %p230 = por %p228, %p229
    %p231 = scmp.ne.s32.totalorder %s219, %s220
    %p232 = scmp.eq.s32.totalorder %s20, 3
    %p233 = por %p231, %p232
    %p235 = scmp.ne.s32.totalorder %s220, %s234
    %p236 = scmp.eq.s32.totalorder %s20, 0
    %p237 = por %p235, %p236
    %p238 = scmp.le.s32.totalorder 1, %s14
    %p239 = scmp.lt.s32.totalorder %s14, 5
    %p240 = pnand %p238, %p239
    %p241 = pneg %p240
    // Predicated region
    $region9: #{attention_module_forward.1} parent=5 // pred_check
      _
    $region10: #{attention_module_forward.1} parent=5 // pred_check_branch
      %243 = sbr.rel (%p240) target = $region12
    $region11: #{attention_module_forward.1} parent=5 // pred_region
      %s244 = ssub.s32 %s14, 1
      // Predicated region
      $region13: #{attention_module_forward.1} parent=11 // pred_check
        %p245 = pneg %p125
      $region14: #{attention_module_forward.1} parent=11 // pred_check_branch
        %247 = sbr.rel (%p245) target = $region16
      $region15: #{attention_module_forward.1} parent=11 // pred_region
        _
      $region16: #{attention_module_forward.1} parent=11 // pred_fallthru
        _
      // Predicated region
      $region17: #{attention_module_forward.1} parent=11 // pred_check
        %p248 = pneg %p146
      $region18: #{attention_module_forward.1} parent=11 // pred_check_branch
        %250 = sbr.rel (%p248) target = $region20
      $region19: #{attention_module_forward.1} parent=11 // pred_region
        _
      $region20: #{attention_module_forward.1} parent=11 // pred_fallthru
        _
      // Predicated region
      $region21: #{attention_module_forward.1} parent=11 // pred_check
        %p251 = pneg %p167
      $region22: #{attention_module_forward.1} parent=11 // pred_check_branch
        %253 = sbr.rel (%p251) target = $region24
      $region23: #{attention_module_forward.1} parent=11 // pred_region
        _
      $region24: #{attention_module_forward.1} parent=11 // pred_fallthru
        _
      // Predicated region
      $region25: #{attention_module_forward.1} parent=11 // pred_check
        %p254 = pneg %p188
      $region26: #{attention_module_forward.1} parent=11 // pred_check_branch
        %256 = sbr.rel (%p254) target = $region28
      $region27: #{attention_module_forward.1} parent=11 // pred_region
        _
      $region28: #{attention_module_forward.1} parent=11 // pred_fallthru
        _
      // Predicated region
      $region29: #{attention_module_forward.1} parent=11 // pred_check
        %p257 = pneg %p209
      $region30: #{attention_module_forward.1} parent=11 // pred_check_branch
        %259 = sbr.rel (%p257) target = $region32
      $region31: #{attention_module_forward.1} parent=11 // pred_region
        _
      $region32: #{attention_module_forward.1} parent=11 // pred_fallthru
        _
    $region12: #{attention_module_forward.1} parent=5 // pred_fallthru
      _
    %p260 = scmp.lt.s32.totalorder %s14, 4
    // Predicated region
    $region33: #{attention_module_forward.1} parent=5 // pred_check
      %p261 = pneg %p260
    $region34: #{attention_module_forward.1} parent=5 // pred_check_branch
      %263 = sbr.rel (%p261) target = $region36
    $region35: #{attention_module_forward.1} parent=5 // pred_region
      // Predicated region
      $region37: #{attention_module_forward.1} parent=35 // pred_check
        %p264 = pneg %p46
      $region38: #{attention_module_forward.1} parent=35 // pred_check_branch
        %266 = sbr.rel (%p264) target = $region40
      $region39: #{attention_module_forward.1} parent=35 // pred_region
        %s267 = smul.u32 32, %s22
        %p268 = scmp.lt.s32.totalorder %s267, 63
        %s269 = scalar_select %p268, %s267, 63
        %s270 = smul.addr %s269, 8
        %s271 = scalar_lea.vmem %s0, %s270
        %s272 = smul.u32 32, %s22
      $region40: #{attention_module_forward.1} parent=35 // pred_fallthru
        _
      // Predicated region
      $region41: #{attention_module_forward.1} parent=35 // pred_check
        %p273 = pneg %p72
      $region42: #{attention_module_forward.1} parent=35 // pred_check_branch
        %275 = sbr.rel (%p273) target = $region44
      $region43: #{attention_module_forward.1} parent=35 // pred_region
        %s276 = smul.u32 2, %s22
        %p277 = scmp.lt.s32.totalorder %s276, 3
        %s278 = scalar_select %p277, %s276, 3
        %s279 = scalar_lea.vmem %s1, %s278
        %s280 = smul.u32 2, %s22
      $region44: #{attention_module_forward.1} parent=35 // pred_fallthru
        _
      // Predicated region
      $region45: #{attention_module_forward.1} parent=35 // pred_check
        %p281 = pneg %p98
      $region46: #{attention_module_forward.1} parent=35 // pred_check_branch
        %283 = sbr.rel (%p281) target = $region48
      $region47: #{attention_module_forward.1} parent=35 // pred_region
        %s284 = smul.u32 32, %s22
        %p285 = scmp.lt.s32.totalorder %s284, 63
        %s286 = scalar_select %p285, %s284, 63
        %s287 = smul.addr %s286, 8
        %s288 = scalar_lea.vmem %s2, %s287
        %s289 = smul.u32 32, %s22
      $region48: #{attention_module_forward.1} parent=35 // pred_fallthru
        _
    $region36: #{attention_module_forward.1} parent=5 // pred_fallthru
      _
    %p290 = scmp.le.s32.totalorder 1, %s14
    %p291 = scmp.lt.s32.totalorder %s14, 5
    %p292 = pnand %p290, %p291
    %p293 = pneg %p292
    // Predicated region
    $region49: #{attention_module_forward.1} parent=5 // pred_check
      _
    $region50: #{attention_module_forward.1} parent=5 // pred_check_branch
      %295 = sbr.rel (%p292) target = $region52
    $region51: #{attention_module_forward.1} parent=5 // pred_region
      %s296 = ssub.s32 %s14, 1
      %s297 = smul.u32 32, %s24
      %p298 = scmp.lt.s32.totalorder %s297, 63
      %s299 = scalar_select %p298, %s297, 63
      %s300 = smul.addr %s299, 8
      %s301 = scalar_lea.vmem %s0, %s300
      %p302 = pneg %p52
      %p303 = pneg %p49
      %s304 = smul.u32 2, %s24
      %p305 = scmp.lt.s32.totalorder %s304, 3
      %s306 = scalar_select %p305, %s304, 3
      %s307 = scalar_lea.vmem %s1, %s306
      %p308 = pneg %p78
      %p309 = pneg %p75
      %s310 = smul.u32 32, %s24
      %p311 = scmp.lt.s32.totalorder %s310, 63
      %s312 = scalar_select %p311, %s310, 63
      %s313 = smul.addr %s312, 8
      %s314 = scalar_lea.vmem %s2, %s313
      %p315 = pneg %p104
      %p316 = pneg %p101
      %p317 = pneg %p125
      %p318 = pneg %p122
      %p319 = pneg %p146
      %p320 = pneg %p143
      %p321 = pneg %p167
      %p322 = pneg %p164
      %p323 = pneg %p188
      %p324 = pneg %p185
      %p325 = pneg %p209
      %p326 = pneg %p206
      %p327 = pneg %p230
      %p328 = pneg %p227
      %s329 = smul.u32 32, %s24
      %p330 = scmp.lt.s32.totalorder %s329, 63
      %s331 = scalar_select %p330, %s329, 63
      %s332 = smul.addr %s331, 8
      %s333 = scalar_lea.vmem %s0, %s332
      %s334 = smul.u32 32, %s24
      %s335 = smul.u32 2, %s24
      %p336 = scmp.lt.s32.totalorder %s335, 3
      %s337 = scalar_select %p336, %s335, 3
      %s338 = scalar_lea.vmem %s1, %s337
      %s339 = smul.u32 2, %s24
      %s340 = smul.u32 32, %s24
      %p341 = scmp.lt.s32.totalorder %s340, 63
      %s342 = scalar_select %p341, %s340, 63
      %s343 = smul.addr %s342, 8
      %s344 = scalar_lea.vmem %s2, %s343
      %s345 = smul.u32 32, %s24
      %v347 = vld [vmem:[%s333] sm:$0xff]
      %v348 = vld [vmem:[%s333 + $0x8] sm:$0xff]
      %v349 = vld [vmem:[%s333 + $0x10] sm:$0xff]
      %v350 = vld [vmem:[%s333 + $0x18] sm:$0xff]
      %v351 = vld [vmem:[%s333 + $0x20] sm:$0xff]
      %v352 = vld [vmem:[%s333 + $0x28] sm:$0xff]
      %v353 = vld [vmem:[%s333 + $0x30] sm:$0xff]
      %v354 = vld [vmem:[%s333 + $0x38] sm:$0xff]
      %v355 = vld [vmem:[%s333 + $0x40] sm:$0xff]
      %v356 = vld [vmem:[%s333 + $0x48] sm:$0xff]
      %v357 = vld [vmem:[%s333 + $0x50] sm:$0xff]
      %v358 = vld [vmem:[%s333 + $0x58] sm:$0xff]
      %v359 = vld [vmem:[%s333 + $0x60] sm:$0xff]
      %v360 = vld [vmem:[%s333 + $0x68] sm:$0xff]
      %v361 = vld [vmem:[%s333 + $0x70] sm:$0xff]
      %v362 = vld [vmem:[%s333 + $0x78] sm:$0xff]
      %v363 = vld [vmem:[%s333 + $0x80] sm:$0xff]
      %v364 = vld [vmem:[%s333 + $0x88] sm:$0xff]
      %v365 = vld [vmem:[%s333 + $0x90] sm:$0xff]
      %v366 = vld [vmem:[%s333 + $0x98] sm:$0xff]
      %v367 = vld [vmem:[%s333 + $0xa0] sm:$0xff]
      %v368 = vld [vmem:[%s333 + $0xa8] sm:$0xff]
      %v369 = vld [vmem:[%s333 + $0xb0] sm:$0xff]
      %v370 = vld [vmem:[%s333 + $0xb8] sm:$0xff]
      %v371 = vld [vmem:[%s333 + $0xc0] sm:$0xff]
      %v372 = vld [vmem:[%s333 + $0xc8] sm:$0xff]
      %v373 = vld [vmem:[%s333 + $0xd0] sm:$0xff]
      %v374 = vld [vmem:[%s333 + $0xd8] sm:$0xff]
      %v375 = vld [vmem:[%s333 + $0xe0] sm:$0xff]
      %v376 = vld [vmem:[%s333 + $0xe8] sm:$0xff]
      %v377 = vld [vmem:[%s333 + $0xf0] sm:$0xff]
      %v378 = vld [vmem:[%s333 + $0xf8] sm:$0xff]
      %v379 = vpack.c.bf16 %v348, %v347
      %v380 = vpack.c.bf16 %v350, %v349
      %v381 = vpack.c.bf16 %v352, %v351
      %v382 = vpack.c.bf16 %v354, %v353
      %v383 = vpack.c.bf16 %v356, %v355
      %v384 = vpack.c.bf16 %v358, %v357
      %v385 = vpack.c.bf16 %v360, %v359
      %v386 = vpack.c.bf16 %v362, %v361
      %v387 = vpack.c.bf16 %v364, %v363
      %v388 = vpack.c.bf16 %v366, %v365
      %v389 = vpack.c.bf16 %v368, %v367
      %v390 = vpack.c.bf16 %v370, %v369
      %v391 = vpack.c.bf16 %v372, %v371
      %v392 = vpack.c.bf16 %v374, %v373
      %v393 = vpack.c.bf16 %v376, %v375
      %v394 = vpack.c.bf16 %v378, %v377
      %v395 = vld [vmem:[%s3] sm:$0xf]
      %v396 = vld [vmem:[%s3 + $0x4] sm:$0xf]
      %v397 = vld [vmem:[%s3 + $0x8] sm:$0xf]
      %v398 = vld [vmem:[%s3 + $0xc] sm:$0xf]
      %v399 = vld [vmem:[%s3 + $0x10] sm:$0xf]
      %v400 = vld [vmem:[%s3 + $0x14] sm:$0xf]
      %v401 = vld [vmem:[%s3 + $0x18] sm:$0xf]
      %v402 = vld [vmem:[%s3 + $0x1c] sm:$0xf]
      %v403 = vld [vmem:[%s3 + $0x20] sm:$0xf]
      %v404 = vld [vmem:[%s3 + $0x24] sm:$0xf]
      %v405 = vld [vmem:[%s3 + $0x28] sm:$0xf]
      %v406 = vld [vmem:[%s3 + $0x2c] sm:$0xf]
      %v407 = vld [vmem:[%s3 + $0x30] sm:$0xf]
      %v408 = vld [vmem:[%s3 + $0x34] sm:$0xf]
      %v409 = vld [vmem:[%s3 + $0x38] sm:$0xf]
      %v410 = vld [vmem:[%s3 + $0x3c] sm:$0xf]
      %v411 = vld [vmem:[%s4] sm:$0x1]
      %v413 = vperm.slane %v411, 0
      %v431 = vunpack.c.l.b16 %v395
      %v432 = vunpack.c.l.b16 %v396
      %v433 = vunpack.c.l.b16 %v397
      %v434 = vunpack.c.l.b16 %v398
      %v435 = vunpack.c.l.b16 %v399
      %v436 = vunpack.c.l.b16 %v400
      %v437 = vunpack.c.l.b16 %v401
      %v438 = vunpack.c.l.b16 %v402
      %v439 = vunpack.c.l.b16 %v403
      %v440 = vunpack.c.l.b16 %v404
      %v441 = vunpack.c.l.b16 %v405
      %v442 = vunpack.c.l.b16 %v406
      %v443 = vunpack.c.l.b16 %v407
      %v444 = vunpack.c.l.b16 %v408
      %v445 = vunpack.c.l.b16 %v409
      %v446 = vunpack.c.l.b16 %v410
      %v447 = vpack.c.b16 %v432, %v431
      %v448 = vpack.c.b16 %v434, %v433
      %v449 = vpack.c.b16 %v436, %v435
      %v450 = vpack.c.b16 %v438, %v437
      %v451 = vpack.c.b16 %v440, %v439
      %v452 = vpack.c.b16 %v442, %v441
      %v453 = vpack.c.b16 %v444, %v443
      %v454 = vpack.c.b16 %v446, %v445
      %463 = vmatpush.bf16.msra.mxu0 %v454
      %464 = vmatpush.bf16.msra.mxu0 %v453
      %465 = vmatpush.bf16.msra.mxu0 %v452
      %466 = vmatpush.bf16.msra.mxu0 %v451
      %467 = vmatpush.bf16.msra.mxu0 %v450
      %468 = vmatpush.bf16.msra.mxu0 %v449
      %469 = vmatpush.bf16.msra.mxu0 %v448
      %470 = vmatpush.bf16.msra.mxu0 %v447
      %471 = vmatmul.bf16.gmra.mxu0 %v379
      %v472 = vpop.f32.mrf.mxu0
      %v473 = vadd.f32 %v413, %v472
      %v474 = vpop.f32.mrf.mxu0
      %v475 = vadd.f32 %v413, %v474
      %476 = vmatmul.bf16.gmra.mxu0 %v380
      %v477 = vpop.f32.mrf.mxu0
      %v478 = vadd.f32 %v413, %v477
      %v479 = vpop.f32.mrf.mxu0
      %v480 = vadd.f32 %v413, %v479
      %481 = vmatmul.bf16.gmra.mxu0 %v381
      %v482 = vpop.f32.mrf.mxu0
      %v483 = vadd.f32 %v413, %v482
      %v484 = vpop.f32.mrf.mxu0
      %v485 = vadd.f32 %v413, %v484
      %486 = vmatmul.bf16.gmra.mxu0 %v382
      %v487 = vpop.f32.mrf.mxu0
      %v488 = vadd.f32 %v413, %v487
      %v489 = vpop.f32.mrf.mxu0
      %v490 = vadd.f32 %v413, %v489
      %491 = vmatmul.bf16.gmra.mxu0 %v383
      %v492 = vpop.f32.mrf.mxu0
      %v493 = vadd.f32 %v413, %v492
      %v494 = vpop.f32.mrf.mxu0
      %v495 = vadd.f32 %v413, %v494
      %496 = vmatmul.bf16.gmra.mxu0 %v384
      %v497 = vpop.f32.mrf.mxu0
      %v498 = vadd.f32 %v413, %v497
      %v499 = vpop.f32.mrf.mxu0
      %v500 = vadd.f32 %v413, %v499
      %501 = vmatmul.bf16.gmra.mxu0 %v385
      %v502 = vpop.f32.mrf.mxu0
      %v503 = vadd.f32 %v413, %v502
      %v504 = vpop.f32.mrf.mxu0
      %v505 = vadd.f32 %v413, %v504
      %506 = vmatmul.bf16.gmra.mxu0 %v386
      %v507 = vpop.f32.mrf.mxu0
      %v508 = vadd.f32 %v413, %v507
      %v509 = vpop.f32.mrf.mxu0
      %v510 = vadd.f32 %v413, %v509
      %511 = vmatmul.bf16.gmra.mxu0 %v387
      %v512 = vpop.f32.mrf.mxu0
      %v513 = vadd.f32 %v413, %v512
      %v514 = vpop.f32.mrf.mxu0
      %v515 = vadd.f32 %v413, %v514
      %516 = vmatmul.bf16.gmra.mxu0 %v388
      %v517 = vpop.f32.mrf.mxu0
      %v518 = vadd.f32 %v413, %v517
      %v519 = vpop.f32.mrf.mxu0
      %v520 = vadd.f32 %v413, %v519
      %521 = vmatmul.bf16.gmra.mxu0 %v389
      %v522 = vpop.f32.mrf.mxu0
      %v523 = vadd.f32 %v413, %v522
      %v524 = vpop.f32.mrf.mxu0
      %v525 = vadd.f32 %v413, %v524
      %526 = vmatmul.bf16.gmra.mxu0 %v390
      %v527 = vpop.f32.mrf.mxu0
      %v528 = vadd.f32 %v413, %v527
      %v529 = vpop.f32.mrf.mxu0
      %v530 = vadd.f32 %v413, %v529
      %531 = vmatmul.bf16.gmra.mxu0 %v391
      %v532 = vpop.f32.mrf.mxu0
      %v533 = vadd.f32 %v413, %v532
      %v534 = vpop.f32.mrf.mxu0
      %v535 = vadd.f32 %v413, %v534
      %536 = vmatmul.bf16.gmra.mxu0 %v392
      %v537 = vpop.f32.mrf.mxu0
      %v538 = vadd.f32 %v413, %v537
      %v539 = vpop.f32.mrf.mxu0
      %v540 = vadd.f32 %v413, %v539
      %541 = vmatmul.bf16.gmra.mxu0 %v393
      %v542 = vpop.f32.mrf.mxu0
      %v543 = vadd.f32 %v413, %v542
      %v544 = vpop.f32.mrf.mxu0
      %v545 = vadd.f32 %v413, %v544
      %546 = vmatmul.bf16.gmra.mxu0 %v394
      %v547 = vpop.f32.mrf.mxu0
      %v548 = vadd.f32 %v413, %v547
      %v549 = vpop.f32.mrf.mxu0
      %v550 = vadd.f32 %v413, %v549
      %551 = vdwg.mxu0
      %v552 = vmax.f32 %v473, 0.0
      %v553 = vmax.f32 %v475, 0.0
      %v554 = vmax.f32 %v478, 0.0
      %v555 = vmax.f32 %v480, 0.0
      %v556 = vmax.f32 %v483, 0.0
      %v557 = vmax.f32 %v485, 0.0
      %v558 = vmax.f32 %v488, 0.0
      %v559 = vmax.f32 %v490, 0.0
      %v560 = vmax.f32 %v493, 0.0
      %v561 = vmax.f32 %v495, 0.0
      %v562 = vmax.f32 %v498, 0.0
      %v563 = vmax.f32 %v500, 0.0
      %v564 = vmax.f32 %v503, 0.0
      %v565 = vmax.f32 %v505, 0.0
      %v566 = vmax.f32 %v508, 0.0
      %v567 = vmax.f32 %v510, 0.0
      %v568 = vmax.f32 %v513, 0.0
      %v569 = vmax.f32 %v515, 0.0
      %v570 = vmax.f32 %v518, 0.0
      %v571 = vmax.f32 %v520, 0.0
      %v572 = vmax.f32 %v523, 0.0
      %v573 = vmax.f32 %v525, 0.0
      %v574 = vmax.f32 %v528, 0.0
      %v575 = vmax.f32 %v530, 0.0
      %v576 = vmax.f32 %v533, 0.0
      %v577 = vmax.f32 %v535, 0.0
      %v578 = vmax.f32 %v538, 0.0
      %v579 = vmax.f32 %v540, 0.0
      %v580 = vmax.f32 %v543, 0.0
      %v581 = vmax.f32 %v545, 0.0
      %v582 = vmax.f32 %v548, 0.0
      %v583 = vmax.f32 %v550, 0.0
      %v584 = vpack.c.bf16 %v553, %v552
      %v585 = vpack.c.bf16 %v555, %v554
      %v586 = vpack.c.bf16 %v557, %v556
      %v587 = vpack.c.bf16 %v559, %v558
      %v588 = vpack.c.bf16 %v561, %v560
      %v589 = vpack.c.bf16 %v563, %v562
      %v590 = vpack.c.bf16 %v565, %v564
      %v591 = vpack.c.bf16 %v567, %v566
      %v592 = vpack.c.bf16 %v569, %v568
      %v593 = vpack.c.bf16 %v571, %v570
      %v594 = vpack.c.bf16 %v573, %v572
      %v595 = vpack.c.bf16 %v575, %v574
      %v596 = vpack.c.bf16 %v577, %v576
      %v597 = vpack.c.bf16 %v579, %v578
      %v598 = vpack.c.bf16 %v581, %v580
      %v599 = vpack.c.bf16 %v583, %v582
      %v600 = vld [vmem:[%s5] sm:$0xf]
      %v601 = vld [vmem:[%s5 + $0x4] sm:$0xf]
      %v602 = vld [vmem:[%s5 + $0x8] sm:$0xf]
      %v603 = vld [vmem:[%s5 + $0xc] sm:$0xf]
      %v604 = vld [vmem:[%s5 + $0x10] sm:$0xf]
      %v605 = vld [vmem:[%s5 + $0x14] sm:$0xf]
      %v606 = vld [vmem:[%s5 + $0x18] sm:$0xf]
      %v607 = vld [vmem:[%s5 + $0x1c] sm:$0xf]
      %v608 = vld [vmem:[%s5 + $0x20] sm:$0xf]
      %v609 = vld [vmem:[%s5 + $0x24] sm:$0xf]
      %v610 = vld [vmem:[%s5 + $0x28] sm:$0xf]
      %v611 = vld [vmem:[%s5 + $0x2c] sm:$0xf]
      %v612 = vld [vmem:[%s5 + $0x30] sm:$0xf]
      %v613 = vld [vmem:[%s5 + $0x34] sm:$0xf]
      %v614 = vld [vmem:[%s5 + $0x38] sm:$0xf]
      %v615 = vld [vmem:[%s5 + $0x3c] sm:$0xf]
      %v616 = vld [vmem:[%s6] sm:$0x1]
      %v618 = vperm.slane %v616, 0
      %v636 = vunpack.c.l.b16 %v600
      %v637 = vunpack.c.l.b16 %v601
      %v638 = vunpack.c.l.b16 %v602
      %v639 = vunpack.c.l.b16 %v603
      %v640 = vunpack.c.l.b16 %v604
      %v641 = vunpack.c.l.b16 %v605
      %v642 = vunpack.c.l.b16 %v606
      %v643 = vunpack.c.l.b16 %v607
      %v644 = vunpack.c.l.b16 %v608
      %v645 = vunpack.c.l.b16 %v609
      %v646 = vunpack.c.l.b16 %v610
      %v647 = vunpack.c.l.b16 %v611
      %v648 = vunpack.c.l.b16 %v612
      %v649 = vunpack.c.l.b16 %v613
      %v650 = vunpack.c.l.b16 %v614
      %v651 = vunpack.c.l.b16 %v615
      %v652 = vpack.c.b16 %v637, %v636
      %v653 = vpack.c.b16 %v639, %v638
      %v654 = vpack.c.b16 %v641, %v640
      %v655 = vpack.c.b16 %v643, %v642
      %v656 = vpack.c.b16 %v645, %v644
      %v657 = vpack.c.b16 %v647, %v646
      %v658 = vpack.c.b16 %v649, %v648
      %v659 = vpack.c.b16 %v651, %v650
      %668 = vmatpush.bf16.msra.mxu0 %v659
      %669 = vmatpush.bf16.msra.mxu0 %v658
      %670 = vmatpush.bf16.msra.mxu0 %v657
      %671 = vmatpush.bf16.msra.mxu0 %v656
      %672 = vmatpush.bf16.msra.mxu0 %v655
      %673 = vmatpush.bf16.msra.mxu0 %v654
      %674 = vmatpush.bf16.msra.mxu0 %v653
      %675 = vmatpush.bf16.msra.mxu0 %v652
      %676 = vmatmul.bf16.gmra.mxu0 %v584
      %v677 = vpop.f32.mrf.mxu0
      %v678 = vadd.f32 %v618, %v677
      %v679 = vpop.f32.mrf.mxu0
      %v680 = vadd.f32 %v618, %v679
      %681 = vmatmul.bf16.gmra.mxu0 %v585
      %v682 = vpop.f32.mrf.mxu0
      %v683 = vadd.f32 %v618, %v682
      %v684 = vpop.f32.mrf.mxu0
      %v685 = vadd.f32 %v618, %v684
      %686 = vmatmul.bf16.gmra.mxu0 %v586
      %v687 = vpop.f32.mrf.mxu0
      %v688 = vadd.f32 %v618, %v687
      %v689 = vpop.f32.mrf.mxu0
      %v690 = vadd.f32 %v618, %v689
      %691 = vmatmul.bf16.gmra.mxu0 %v587
      %v692 = vpop.f32.mrf.mxu0
      %v693 = vadd.f32 %v618, %v692
      %v694 = vpop.f32.mrf.mxu0
      %v695 = vadd.f32 %v618, %v694
      %696 = vmatmul.bf16.gmra.mxu0 %v588
      %v697 = vpop.f32.mrf.mxu0
      %v698 = vadd.f32 %v618, %v697
      %v699 = vpop.f32.mrf.mxu0
      %v700 = vadd.f32 %v618, %v699
      %701 = vmatmul.bf16.gmra.mxu0 %v589
      %v702 = vpop.f32.mrf.mxu0
      %v703 = vadd.f32 %v618, %v702
      %v704 = vpop.f32.mrf.mxu0
      %v705 = vadd.f32 %v618, %v704
      %706 = vmatmul.bf16.gmra.mxu0 %v590
      %v707 = vpop.f32.mrf.mxu0
      %v708 = vadd.f32 %v618, %v707
      %v709 = vpop.f32.mrf.mxu0
      %v710 = vadd.f32 %v618, %v709
      %711 = vmatmul.bf16.gmra.mxu0 %v591
      %v712 = vpop.f32.mrf.mxu0
      %v713 = vadd.f32 %v618, %v712
      %v714 = vpop.f32.mrf.mxu0
      %v715 = vadd.f32 %v618, %v714
      %716 = vmatmul.bf16.gmra.mxu0 %v592
      %v717 = vpop.f32.mrf.mxu0
      %v718 = vadd.f32 %v618, %v717
      %v719 = vpop.f32.mrf.mxu0
      %v720 = vadd.f32 %v618, %v719
      %721 = vmatmul.bf16.gmra.mxu0 %v593
      %v722 = vpop.f32.mrf.mxu0
      %v723 = vadd.f32 %v618, %v722
      %v724 = vpop.f32.mrf.mxu0
      %v725 = vadd.f32 %v618, %v724
      %726 = vmatmul.bf16.gmra.mxu0 %v594
      %v727 = vpop.f32.mrf.mxu0
      %v728 = vadd.f32 %v618, %v727
      %v729 = vpop.f32.mrf.mxu0
      %v730 = vadd.f32 %v618, %v729
      %731 = vmatmul.bf16.gmra.mxu0 %v595
      %v732 = vpop.f32.mrf.mxu0
      %v733 = vadd.f32 %v618, %v732
      %v734 = vpop.f32.mrf.mxu0
      %v735 = vadd.f32 %v618, %v734
      %736 = vmatmul.bf16.gmra.mxu0 %v596
      %v737 = vpop.f32.mrf.mxu0
      %v738 = vadd.f32 %v618, %v737
      %v739 = vpop.f32.mrf.mxu0
      %v740 = vadd.f32 %v618, %v739
      %741 = vmatmul.bf16.gmra.mxu0 %v597
      %v742 = vpop.f32.mrf.mxu0
      %v743 = vadd.f32 %v618, %v742
      %v744 = vpop.f32.mrf.mxu0
      %v745 = vadd.f32 %v618, %v744
      %746 = vmatmul.bf16.gmra.mxu0 %v598
      %v747 = vpop.f32.mrf.mxu0
      %v748 = vadd.f32 %v618, %v747
      %v749 = vpop.f32.mrf.mxu0
      %v750 = vadd.f32 %v618, %v749
      %751 = vmatmul.bf16.gmra.mxu0 %v599
      %v752 = vpop.f32.mrf.mxu0
      %v753 = vadd.f32 %v618, %v752
      %v754 = vpop.f32.mrf.mxu0
      %v755 = vadd.f32 %v618, %v754
      %756 = vdwg.mxu0
      %v757 = vtanh.pop %v678
      %v758 = vtanh.pop %v680
      %v759 = vtanh.pop %v683
      %v760 = vtanh.pop %v685
      %v761 = vtanh.pop %v688
      %v762 = vtanh.pop %v690
      %v763 = vtanh.pop %v693
      %v764 = vtanh.pop %v695
      %v765 = vtanh.pop %v698
      %v766 = vtanh.pop %v700
      %v767 = vtanh.pop %v703
      %v768 = vtanh.pop %v705
      %v769 = vtanh.pop %v708
      %v770 = vtanh.pop %v710
      %v771 = vtanh.pop %v713
      %v772 = vtanh.pop %v715
      %v773 = vtanh.pop %v718
      %v774 = vtanh.pop %v720
      %v775 = vtanh.pop %v723
      %v776 = vtanh.pop %v725
      %v777 = vtanh.pop %v728
      %v778 = vtanh.pop %v730
      %v779 = vtanh.pop %v733
      %v780 = vtanh.pop %v735
      %v781 = vtanh.pop %v738
      %v782 = vtanh.pop %v740
      %v783 = vtanh.pop %v743
      %v784 = vtanh.pop %v745
      %v785 = vtanh.pop %v748
      %v786 = vtanh.pop %v750
      %v787 = vtanh.pop %v753
      %v788 = vtanh.pop %v755
      %v789 = vmul.f32 %v757, %v347
      %v790 = vmul.f32 %v758, %v348
      %v791 = vmul.f32 %v759, %v349
      %v792 = vmul.f32 %v760, %v350
      %v793 = vmul.f32 %v761, %v351
      %v794 = vmul.f32 %v762, %v352
      %v795 = vmul.f32 %v763, %v353
      %v796 = vmul.f32 %v764, %v354
      %v797 = vmul.f32 %v765, %v355
      %v798 = vmul.f32 %v766, %v356
      %v799 = vmul.f32 %v767, %v357
      %v800 = vmul.f32 %v768, %v358
      %v801 = vmul.f32 %v769, %v359
      %v802 = vmul.f32 %v770, %v360
      %v803 = vmul.f32 %v771, %v361
      %v804 = vmul.f32 %v772, %v362
      %v805 = vmul.f32 %v773, %v363
      %v806 = vmul.f32 %v774, %v364
      %v807 = vmul.f32 %v775, %v365
      %v808 = vmul.f32 %v776, %v366
      %v809 = vmul.f32 %v777, %v367
      %v810 = vmul.f32 %v778, %v368
      %v811 = vmul.f32 %v779, %v369
      %v812 = vmul.f32 %v780, %v370
      %v813 = vmul.f32 %v781, %v371
      %v814 = vmul.f32 %v782, %v372
      %v815 = vmul.f32 %v783, %v373
      %v816 = vmul.f32 %v784, %v374
      %v817 = vmul.f32 %v785, %v375
      %v818 = vmul.f32 %v786, %v376
      %v819 = vmul.f32 %v787, %v377
      %v820 = vmul.f32 %v788, %v378
      %v821 = vadd.f32 %v789, %v347
      %v822 = vadd.f32 %v790, %v348
      %v823 = vadd.f32 %v791, %v349
      %v824 = vadd.f32 %v792, %v350
      %v825 = vadd.f32 %v793, %v351
      %v826 = vadd.f32 %v794, %v352
      %v827 = vadd.f32 %v795, %v353
      %v828 = vadd.f32 %v796, %v354
      %v829 = vadd.f32 %v797, %v355
      %v830 = vadd.f32 %v798, %v356
      %v831 = vadd.f32 %v799, %v357
      %v832 = vadd.f32 %v800, %v358
      %v833 = vadd.f32 %v801, %v359
      %v834 = vadd.f32 %v802, %v360
      %v835 = vadd.f32 %v803, %v361
      %v836 = vadd.f32 %v804, %v362
      %v837 = vadd.f32 %v805, %v363
      %v838 = vadd.f32 %v806, %v364
      %v839 = vadd.f32 %v807, %v365
      %v840 = vadd.f32 %v808, %v366
      %v841 = vadd.f32 %v809, %v367
      %v842 = vadd.f32 %v810, %v368
      %v843 = vadd.f32 %v811, %v369
      %v844 = vadd.f32 %v812, %v370
      %v845 = vadd.f32 %v813, %v371
      %v846 = vadd.f32 %v814, %v372
      %v847 = vadd.f32 %v815, %v373
      %v848 = vadd.f32 %v816, %v374
      %v849 = vadd.f32 %v817, %v375
      %v850 = vadd.f32 %v818, %v376
      %v851 = vadd.f32 %v819, %v377
      %v852 = vadd.f32 %v820, %v378
      %v853 = vpack.c.bf16 %v822, %v821
      %v854 = vpack.c.bf16 %v824, %v823
      %v855 = vpack.c.bf16 %v826, %v825
      %v856 = vpack.c.bf16 %v828, %v827
      %v857 = vpack.c.bf16 %v830, %v829
      %v858 = vpack.c.bf16 %v832, %v831
      %v859 = vpack.c.bf16 %v834, %v833
      %v860 = vpack.c.bf16 %v836, %v835
      %v861 = vpack.c.bf16 %v838, %v837
      %v862 = vpack.c.bf16 %v840, %v839
      %v863 = vpack.c.bf16 %v842, %v841
      %v864 = vpack.c.bf16 %v844, %v843
      %v865 = vpack.c.bf16 %v846, %v845
      %v866 = vpack.c.bf16 %v848, %v847
      %v867 = vpack.c.bf16 %v850, %v849
      %v868 = vpack.c.bf16 %v852, %v851
      %v869 = vld [vmem:[%s338] sm:$0x3]
      %v870 = vlaneseq
      %v871 = vshrl.u32 %v870, 7
      %v872 = vperm.slane %v869, 0
      %v873 = vperm.slane %v869, 1
      %vm874 = vcmp.eq.s32.totalorder %v871, %v872
      %vm875 = vcmp.eq.s32.totalorder %v871, %v873
      %v876 = vsel %vm874, 1, 0
      %v877 = vsel %vm875, 1, 0
      %v878 = vcvt.s32.f32 %v876
      %v879 = vcvt.s32.f32 %v877
      %v880 = vpack.c.bf16 %v878, %v878
      %v881 = vpack.c.bf16 %v879, %v879
      %p882 = scmp.eq.s32.totalorder %s23, 0
      %p883 = scmp.eq.s32.totalorder %s24, 0
      %p884 = pnand %p882, %p883
      %p885 = pneg %p884
      // Predicated region
      $region53: #{attention_module_forward.1} parent=51 // pred_check
        _
      $region54: #{attention_module_forward.1} parent=51 // pred_check_branch
        %887 = sbr.rel (%p884) target = $region56
      $region55: #{attention_module_forward.1} parent=51 // pred_region
        %888 = vst [vmem:[#allocation2] sm:$0xff] 0.0
        %vm889 = vcmask 7168
        %890 = vst.msk [vmem:[#allocation3] sm:$0xff] %vm889, 0.0
        %891 = vst [vmem:[%s8] sm:$0xff] 0.0
      $region56: #{attention_module_forward.1} parent=51 // pred_fallthru
        _
      // Predicated region
      $region57: #{attention_module_forward.1} parent=51 // pred_check
        %p892 = pneg %p882
      $region58: #{attention_module_forward.1} parent=51 // pred_check_branch
        %894 = sbr.rel (%p892) target = $region60
      $region59: #{attention_module_forward.1} parent=51 // pred_region
        %v895 = vld [vmem:[#allocation2] sm:$0xff]
        %896 = vmatpush.bf16.msra.mxu0 %v860
        %897 = vmatpush.bf16.msra.mxu0 %v859
        %898 = vmatpush.bf16.msra.mxu0 %v858
        %899 = vmatpush.bf16.msra.mxu0 %v857
        %900 = vmatpush.bf16.msra.mxu0 %v856
        %901 = vmatpush.bf16.msra.mxu0 %v855
        %902 = vmatpush.bf16.msra.mxu0 %v854
        %903 = vmatpush.bf16.msra.mxu0 %v853
        %904 = vmatmul.bf16.gmra.mxu0 %v880
        %v905 = vpop.f32.mrf.mxu0
        %v906 = vadd.f32 0.0, %v905
        %v907 = vpop.f32.mrf.mxu0
        %908 = vdwg.mxu0
        %909 = vmatpush.bf16.msra.mxu0 %v868
        %910 = vmatpush.bf16.msra.mxu0 %v867
        %911 = vmatpush.bf16.msra.mxu0 %v866
        %912 = vmatpush.bf16.msra.mxu0 %v865
        %913 = vmatpush.bf16.msra.mxu0 %v864
        %914 = vmatpush.bf16.msra.mxu0 %v863
        %915 = vmatpush.bf16.msra.mxu0 %v862
        %916 = vmatpush.bf16.msra.mxu0 %v861
        %917 = vmatmul.bf16.gmra.mxu0 %v881
        %v918 = vpop.f32.mrf.mxu0
        %v919 = vadd.f32 %v906, %v918
        %v920 = vpop.f32.mrf.mxu0
        %921 = vdwg.mxu0
        %v922 = vadd.f32 %v895, %v919
        %923 = vst [vmem:[#allocation2] sm:$0xff] %v922
        %v924 = vld [vmem:[#allocation3] sm:$0xff]
        %v925 = vadd.f32 %v878, %v879
        %926 = vadd.xlane.f32.xlu0 %v925
        %v927 = vpop.xlane.xlu0 %926
        %v928 = vadd.f32 %v924, %v927
        %vm929 = vcmask 7168
        %930 = vst.msk [vmem:[#allocation3] sm:$0xff] %vm929, %v928
      $region60: #{attention_module_forward.1} parent=51 // pred_fallthru
        _
      %p931 = scmp.eq.s32.totalorder %s23, 1
      %p932 = pnand %p931, %p883
      %p933 = pneg %p932
      // Predicated region
      $region61: #{attention_module_forward.1} parent=51 // pred_check
        _
      $region62: #{attention_module_forward.1} parent=51 // pred_check_branch
        %935 = sbr.rel (%p932) target = $region64
      $region63: #{attention_module_forward.1} parent=51 // pred_region
        %v936 = vld [vmem:[#allocation3] sm:$0xff]
        %v937 = vmax.f32 %v936, 1.0
        %v938 = vld [vmem:[#allocation2] sm:$0xff]
        %v939 = vrcp.pop %v937
        %941 = vset.pattern.permute.xlu0 0
        %942 = vperm.xlu0 %941, %v939
        %v943 = vpop.permute.xlu0 %942
        %v945 = vmul.f32 %v938, %v943
        %v946 = vpack.c.bf16 %v945, %v945
        %v947 = vld [vmem:[%s7] sm:$0xf]
        %v948 = vld [vmem:[%s7 + $0x4] sm:$0xf]
        %v949 = vld [vmem:[%s7 + $0x8] sm:$0xf]
        %v950 = vld [vmem:[%s7 + $0xc] sm:$0xf]
        %v951 = vld [vmem:[%s7 + $0x10] sm:$0xf]
        %v952 = vld [vmem:[%s7 + $0x14] sm:$0xf]
        %v953 = vld [vmem:[%s7 + $0x18] sm:$0xf]
        %v954 = vld [vmem:[%s7 + $0x1c] sm:$0xf]
        %v955 = vld [vmem:[%s7 + $0x20] sm:$0xf]
        %v956 = vld [vmem:[%s7 + $0x24] sm:$0xf]
        %v957 = vld [vmem:[%s7 + $0x28] sm:$0xf]
        %v958 = vld [vmem:[%s7 + $0x2c] sm:$0xf]
        %v959 = vld [vmem:[%s7 + $0x30] sm:$0xf]
        %v960 = vld [vmem:[%s7 + $0x34] sm:$0xf]
        %v961 = vld [vmem:[%s7 + $0x38] sm:$0xf]
        %v962 = vld [vmem:[%s7 + $0x3c] sm:$0xf]
        %v979 = vunpack.c.l.b16 %v947
        %v980 = vunpack.c.l.b16 %v948
        %v981 = vunpack.c.l.b16 %v949
        %v982 = vunpack.c.l.b16 %v950
        %v983 = vunpack.c.l.b16 %v951
        %v984 = vunpack.c.l.b16 %v952
        %v985 = vunpack.c.l.b16 %v953
        %v986 = vunpack.c.l.b16 %v954
        %v987 = vunpack.c.l.b16 %v955
        %v988 = vunpack.c.l.b16 %v956
        %v989 = vunpack.c.l.b16 %v957
        %v990 = vunpack.c.l.b16 %v958
        %v991 = vunpack.c.l.b16 %v959
        %v992 = vunpack.c.l.b16 %v960
        %v993 = vunpack.c.l.b16 %v961
        %v994 = vunpack.c.l.b16 %v962
        %v995 = vpack.c.b16 %v980, %v979
        %v996 = vpack.c.b16 %v982, %v981
        %v997 = vpack.c.b16 %v984, %v983
        %v998 = vpack.c.b16 %v986, %v985
        %v999 = vpack.c.b16 %v988, %v987
        %v1000 = vpack.c.b16 %v990, %v989
        %v1001 = vpack.c.b16 %v992, %v991
        %v1002 = vpack.c.b16 %v994, %v993
        %1011 = vmatpush.bf16.msra.mxu0 %v1002
        %1012 = vmatpush.bf16.msra.mxu0 %v1001
        %1013 = vmatpush.bf16.msra.mxu0 %v1000
        %1014 = vmatpush.bf16.msra.mxu0 %v999
        %1015 = vmatpush.bf16.msra.mxu0 %v998
        %1016 = vmatpush.bf16.msra.mxu0 %v997
        %1017 = vmatpush.bf16.msra.mxu0 %v996
        %1018 = vmatpush.bf16.msra.mxu0 %v995
        %1019 = vmatmul.bf16.gmra.mxu0 %v946
        %v1020 = vpop.f32.mrf.mxu0
        %v1021 = vadd.f32 0.0, %v1020
        %v1022 = vpop.f32.mrf.mxu0
        %1023 = vdwg.mxu0
        %v1024 = vtanh.pop %v1021
        %1025 = vst [vmem:[#allocation4] sm:$0xff] %v1024
      $region64: #{attention_module_forward.1} parent=51 // pred_fallthru
        _
      // Predicated region
      $region65: #{attention_module_forward.1} parent=51 // pred_check
        %p1026 = pneg %p931
      $region66: #{attention_module_forward.1} parent=51 // pred_check_branch
        %1028 = sbr.rel (%p1026) target = $region68
      $region67: #{attention_module_forward.1} parent=51 // pred_region
        %v1029 = vld [vmem:[%s344] sm:$0xff]
        %v1030 = vld [vmem:[%s344 + $0x8] sm:$0xff]
        %v1031 = vld [vmem:[%s344 + $0x10] sm:$0xff]
        %v1032 = vld [vmem:[%s344 + $0x18] sm:$0xff]
        %v1033 = vld [vmem:[%s344 + $0x20] sm:$0xff]
        %v1034 = vld [vmem:[%s344 + $0x28] sm:$0xff]
        %v1035 = vld [vmem:[%s344 + $0x30] sm:$0xff]
        %v1036 = vld [vmem:[%s344 + $0x38] sm:$0xff]
        %v1037 = vld [vmem:[%s344 + $0x40] sm:$0xff]
        %v1038 = vld [vmem:[%s344 + $0x48] sm:$0xff]
        %v1039 = vld [vmem:[%s344 + $0x50] sm:$0xff]
        %v1040 = vld [vmem:[%s344 + $0x58] sm:$0xff]
        %v1041 = vld [vmem:[%s344 + $0x60] sm:$0xff]
        %v1042 = vld [vmem:[%s344 + $0x68] sm:$0xff]
        %v1043 = vld [vmem:[%s344 + $0x70] sm:$0xff]
        %v1044 = vld [vmem:[%s344 + $0x78] sm:$0xff]
        %v1045 = vld [vmem:[%s344 + $0x80] sm:$0xff]
        %v1046 = vld [vmem:[%s344 + $0x88] sm:$0xff]
        %v1047 = vld [vmem:[%s344 + $0x90] sm:$0xff]
        %v1048 = vld [vmem:[%s344 + $0x98] sm:$0xff]
        %v1049 = vld [vmem:[%s344 + $0xa0] sm:$0xff]
        %v1050 = vld [vmem:[%s344 + $0xa8] sm:$0xff]
        %v1051 = vld [vmem:[%s344 + $0xb0] sm:$0xff]
        %v1052 = vld [vmem:[%s344 + $0xb8] sm:$0xff]
        %v1053 = vld [vmem:[%s344 + $0xc0] sm:$0xff]
        %v1054 = vld [vmem:[%s344 + $0xc8] sm:$0xff]
        %v1055 = vld [vmem:[%s344 + $0xd0] sm:$0xff]
        %v1056 = vld [vmem:[%s344 + $0xd8] sm:$0xff]
        %v1057 = vld [vmem:[%s344 + $0xe0] sm:$0xff]
        %v1058 = vld [vmem:[%s344 + $0xe8] sm:$0xff]
        %v1059 = vld [vmem:[%s344 + $0xf0] sm:$0xff]
        %v1060 = vld [vmem:[%s344 + $0xf8] sm:$0xff]
        %v1061 = vlaneseq
        %v1062 = vand.u32 %v1061, 127
        %1063 = vset.pattern.permute.xlu0 0
        %1064 = vperm.xlu0 %1063, %v1029
        %v1065 = vpop.permute.xlu0 %1064
        %1066 = vset.pattern.permute.xlu0 0
        %1067 = vperm.xlu0 %1066, %v1030
        %v1068 = vpop.permute.xlu0 %1067
        %1069 = vset.pattern.permute.xlu0 0
        %1070 = vperm.xlu0 %1069, %v1031
        %v1071 = vpop.permute.xlu0 %1070
        %1072 = vset.pattern.permute.xlu0 0
        %1073 = vperm.xlu0 %1072, %v1032
        %v1074 = vpop.permute.xlu0 %1073
        %1075 = vset.pattern.permute.xlu0 0
        %1076 = vperm.xlu0 %1075, %v1033
        %v1077 = vpop.permute.xlu0 %1076
        %1078 = vset.pattern.permute.xlu0 0
        %1079 = vperm.xlu0 %1078, %v1034
        %v1080 = vpop.permute.xlu0 %1079
        %1081 = vset.pattern.permute.xlu0 0
        %1082 = vperm.xlu0 %1081, %v1035
        %v1083 = vpop.permute.xlu0 %1082
        %1084 = vset.pattern.permute.xlu0 0
        %1085 = vperm.xlu0 %1084, %v1036
        %v1086 = vpop.permute.xlu0 %1085
        %1087 = vset.pattern.permute.xlu0 0
        %1088 = vperm.xlu0 %1087, %v1037
        %v1089 = vpop.permute.xlu0 %1088
        %1090 = vset.pattern.permute.xlu0 0
        %1091 = vperm.xlu0 %1090, %v1038
        %v1092 = vpop.permute.xlu0 %1091
        %1093 = vset.pattern.permute.xlu0 0
        %1094 = vperm.xlu0 %1093, %v1039
        %v1095 = vpop.permute.xlu0 %1094
        %1096 = vset.pattern.permute.xlu0 0
        %1097 = vperm.xlu0 %1096, %v1040
        %v1098 = vpop.permute.xlu0 %1097
        %1099 = vset.pattern.permute.xlu0 0
        %1100 = vperm.xlu0 %1099, %v1041
        %v1101 = vpop.permute.xlu0 %1100
        %1102 = vset.pattern.permute.xlu0 0
        %1103 = vperm.xlu0 %1102, %v1042
        %v1104 = vpop.permute.xlu0 %1103
        %1105 = vset.pattern.permute.xlu0 0
        %1106 = vperm.xlu0 %1105, %v1043
        %v1107 = vpop.permute.xlu0 %1106
        %1108 = vset.pattern.permute.xlu0 0
        %1109 = vperm.xlu0 %1108, %v1044
        %v1110 = vpop.permute.xlu0 %1109
        %1111 = vset.pattern.permute.xlu0 0
        %1112 = vperm.xlu0 %1111, %v1045
        %v1113 = vpop.permute.xlu0 %1112
        %1114 = vset.pattern.permute.xlu0 0
        %1115 = vperm.xlu0 %1114, %v1046
        %v1116 = vpop.permute.xlu0 %1115
        %1117 = vset.pattern.permute.xlu0 0
        %1118 = vperm.xlu0 %1117, %v1047
        %v1119 = vpop.permute.xlu0 %1118
        %1120 = vset.pattern.permute.xlu0 0
        %1121 = vperm.xlu0 %1120, %v1048
        %v1122 = vpop.permute.xlu0 %1121
        %1123 = vset.pattern.permute.xlu0 0
        %1124 = vperm.xlu0 %1123, %v1049
        %v1125 = vpop.permute.xlu0 %1124
        %1126 = vset.pattern.permute.xlu0 0
        %1127 = vperm.xlu0 %1126, %v1050
        %v1128 = vpop.permute.xlu0 %1127
        %1129 = vset.pattern.permute.xlu0 0
        %1130 = vperm.xlu0 %1129, %v1051
        %v1131 = vpop.permute.xlu0 %1130
        %1132 = vset.pattern.permute.xlu0 0
        %1133 = vperm.xlu0 %1132, %v1052
        %v1134 = vpop.permute.xlu0 %1133
        %1135 = vset.pattern.permute.xlu0 0
        %1136 = vperm.xlu0 %1135, %v1053
        %v1137 = vpop.permute.xlu0 %1136
        %1138 = vset.pattern.permute.xlu0 0
        %1139 = vperm.xlu0 %1138, %v1054
        %v1140 = vpop.permute.xlu0 %1139
        %1141 = vset.pattern.permute.xlu0 0
        %1142 = vperm.xlu0 %1141, %v1055
        %v1143 = vpop.permute.xlu0 %1142
        %1144 = vset.pattern.permute.xlu0 0
        %1145 = vperm.xlu0 %1144, %v1056
        %v1146 = vpop.permute.xlu0 %1145
        %1147 = vset.pattern.permute.xlu0 0
        %1148 = vperm.xlu0 %1147, %v1057
        %v1149 = vpop.permute.xlu0 %1148
        %1150 = vset.pattern.permute.xlu0 0
        %1151 = vperm.xlu0 %1150, %v1058
        %v1152 = vpop.permute.xlu0 %1151
        %1153 = vset.pattern.permute.xlu0 0
        %1154 = vperm.xlu0 %1153, %v1059
        %v1155 = vpop.permute.xlu0 %1154
        %1156 = vset.pattern.permute.xlu0 0
        %1157 = vperm.xlu0 %1156, %v1060
        %v1158 = vpop.permute.xlu0 %1157
        %vm1159 = vcmp.eq.s32.totalorder %v1062, %v1065
        %vm1160 = vcmp.eq.s32.totalorder %v1062, %v1068
        %vm1161 = vcmp.eq.s32.totalorder %v1062, %v1071
        %vm1162 = vcmp.eq.s32.totalorder %v1062, %v1074
        %vm1163 = vcmp.eq.s32.totalorder %v1062, %v1077
        %vm1164 = vcmp.eq.s32.totalorder %v1062, %v1080
        %vm1165 = vcmp.eq.s32.totalorder %v1062, %v1083
        %vm1166 = vcmp.eq.s32.totalorder %v1062, %v1086
        %vm1167 = vcmp.eq.s32.totalorder %v1062, %v1089
        %vm1168 = vcmp.eq.s32.totalorder %v1062, %v1092
        %vm1169 = vcmp.eq.s32.totalorder %v1062, %v1095
        %vm1170 = vcmp.eq.s32.totalorder %v1062, %v1098
        %vm1171 = vcmp.eq.s32.totalorder %v1062, %v1101
        %vm1172 = vcmp.eq.s32.totalorder %v1062, %v1104
        %vm1173 = vcmp.eq.s32.totalorder %v1062, %v1107
        %vm1174 = vcmp.eq.s32.totalorder %v1062, %v1110
        %vm1175 = vcmp.eq.s32.totalorder %v1062, %v1113
        %vm1176 = vcmp.eq.s32.totalorder %v1062, %v1116
        %vm1177 = vcmp.eq.s32.totalorder %v1062, %v1119
        %vm1178 = vcmp.eq.s32.totalorder %v1062, %v1122
        %vm1179 = vcmp.eq.s32.totalorder %v1062, %v1125
        %vm1180 = vcmp.eq.s32.totalorder %v1062, %v1128
        %vm1181 = vcmp.eq.s32.totalorder %v1062, %v1131
        %vm1182 = vcmp.eq.s32.totalorder %v1062, %v1134
        %vm1183 = vcmp.eq.s32.totalorder %v1062, %v1137
        %vm1184 = vcmp.eq.s32.totalorder %v1062, %v1140
        %vm1185 = vcmp.eq.s32.totalorder %v1062, %v1143
        %vm1186 = vcmp.eq.s32.totalorder %v1062, %v1146
        %vm1187 = vcmp.eq.s32.totalorder %v1062, %v1149
        %vm1188 = vcmp.eq.s32.totalorder %v1062, %v1152
        %vm1189 = vcmp.eq.s32.totalorder %v1062, %v1155
        %vm1190 = vcmp.eq.s32.totalorder %v1062, %v1158
        %v1191 = vsel %vm1159, 1, 0
        %v1192 = vsel %vm1160, 1, 0
        %v1193 = vsel %vm1161, 1, 0
        %v1194 = vsel %vm1162, 1, 0
        %v1195 = vsel %vm1163, 1, 0
        %v1196 = vsel %vm1164, 1, 0
        %v1197 = vsel %vm1165, 1, 0
        %v1198 = vsel %vm1166, 1, 0
        %v1199 = vsel %vm1167, 1, 0
        %v1200 = vsel %vm1168, 1, 0
        %v1201 = vsel %vm1169, 1, 0
        %v1202 = vsel %vm1170, 1, 0
        %v1203 = vsel %vm1171, 1, 0
        %v1204 = vsel %vm1172, 1, 0
        %v1205 = vsel %vm1173, 1, 0
        %v1206 = vsel %vm1174, 1, 0
        %v1207 = vsel %vm1175, 1, 0
        %v1208 = vsel %vm1176, 1, 0
        %v1209 = vsel %vm1177, 1, 0
        %v1210 = vsel %vm1178, 1, 0
        %v1211 = vsel %vm1179, 1, 0
        %v1212 = vsel %vm1180, 1, 0
        %v1213 = vsel %vm1181, 1, 0
        %v1214 = vsel %vm1182, 1, 0
        %v1215 = vsel %vm1183, 1, 0
        %v1216 = vsel %vm1184, 1, 0
        %v1217 = vsel %vm1185, 1, 0
        %v1218 = vsel %vm1186, 1, 0
        %v1219 = vsel %vm1187, 1, 0
        %v1220 = vsel %vm1188, 1, 0
        %v1221 = vsel %vm1189, 1, 0
        %v1222 = vsel %vm1190, 1, 0
        %v1223 = vcvt.s32.f32 %v1191
        %v1224 = vcvt.s32.f32 %v1192
        %v1225 = vcvt.s32.f32 %v1193
        %v1226 = vcvt.s32.f32 %v1194
        %v1227 = vcvt.s32.f32 %v1195
        %v1228 = vcvt.s32.f32 %v1196
        %v1229 = vcvt.s32.f32 %v1197
        %v1230 = vcvt.s32.f32 %v1198
        %v1231 = vcvt.s32.f32 %v1199
        %v1232 = vcvt.s32.f32 %v1200
        %v1233 = vcvt.s32.f32 %v1201
        %v1234 = vcvt.s32.f32 %v1202
        %v1235 = vcvt.s32.f32 %v1203
        %v1236 = vcvt.s32.f32 %v1204
        %v1237 = vcvt.s32.f32 %v1205
        %v1238 = vcvt.s32.f32 %v1206
        %v1239 = vcvt.s32.f32 %v1207
        %v1240 = vcvt.s32.f32 %v1208
        %v1241 = vcvt.s32.f32 %v1209
        %v1242 = vcvt.s32.f32 %v1210
        %v1243 = vcvt.s32.f32 %v1211
        %v1244 = vcvt.s32.f32 %v1212
        %v1245 = vcvt.s32.f32 %v1213
        %v1246 = vcvt.s32.f32 %v1214
        %v1247 = vcvt.s32.f32 %v1215
        %v1248 = vcvt.s32.f32 %v1216
        %v1249 = vcvt.s32.f32 %v1217
        %v1250 = vcvt.s32.f32 %v1218
        %v1251 = vcvt.s32.f32 %v1219
        %v1252 = vcvt.s32.f32 %v1220
        %v1253 = vcvt.s32.f32 %v1221
        %v1254 = vcvt.s32.f32 %v1222
        %v1255 = vpack.c.bf16 %v1224, %v1223
        %v1256 = vpack.c.bf16 %v1226, %v1225
        %v1257 = vpack.c.bf16 %v1228, %v1227
        %v1258 = vpack.c.bf16 %v1230, %v1229
        %v1259 = vpack.c.bf16 %v1232, %v1231
        %v1260 = vpack.c.bf16 %v1234, %v1233
        %v1261 = vpack.c.bf16 %v1236, %v1235
        %v1262 = vpack.c.bf16 %v1238, %v1237
        %v1263 = vpack.c.bf16 %v1240, %v1239
        %v1264 = vpack.c.bf16 %v1242, %v1241
        %v1265 = vpack.c.bf16 %v1244, %v1243
        %v1266 = vpack.c.bf16 %v1246, %v1245
        %v1267 = vpack.c.bf16 %v1248, %v1247
        %v1268 = vpack.c.bf16 %v1250, %v1249
        %v1269 = vpack.c.bf16 %v1252, %v1251
        %v1270 = vpack.c.bf16 %v1254, %v1253
        %v1271 = vld [vmem:[#allocation4] sm:$0xff]
        %v1272 = vpack.c.bf16 %v1271, %v1271
        %vm1273 = vcmask 64512
        %v1275 = vsel %vm1273, %v1255, 0
        %v1278 = vsel %vm1273, %v1256, 0
        %v1281 = vsel %vm1273, %v1257, 0
        %v1284 = vsel %vm1273, %v1258, 0
        %v1287 = vsel %vm1273, %v1259, 0
        %v1290 = vsel %vm1273, %v1260, 0
        %v1293 = vsel %vm1273, %v1261, 0
        %v1296 = vsel %vm1273, %v1262, 0
        %v1299 = vsel %vm1273, %v1263, 0
        %v1302 = vsel %vm1273, %v1264, 0
        %v1305 = vsel %vm1273, %v1265, 0
        %v1308 = vsel %vm1273, %v1266, 0
        %v1311 = vsel %vm1273, %v1267, 0
        %v1314 = vsel %vm1273, %v1268, 0
        %v1317 = vsel %vm1273, %v1269, 0
        %v1320 = vsel %vm1273, %v1270, 0
        %vm1322 = vcmask 1043456
        %v1324 = vsel %vm1322, %v1272, 0
        %1326 = vmatpush.bf16.msra.mxu0 0
        %1327 = vmatpush.bf16.msra.mxu0 0
        %1328 = vmatpush.bf16.msra.mxu0 0
        %1329 = vmatpush.bf16.msra.mxu0 0
        %1330 = vmatpush.bf16.msra.mxu0 0
        %1331 = vmatpush.bf16.msra.mxu0 0
        %1332 = vmatpush.bf16.msra.mxu0 0
        %1333 = vmatpush.bf16.msra.mxu0 %v1324
        %1334 = vmatmul.bf16.gmra.mxu0 %v1275
        %v1335 = vpop.f32.mrf.mxu0
        %v1336 = vadd.f32 0.0, %v1335
        %v1337 = vpop.f32.mrf.mxu0
        %v1338 = vadd.f32 0.0, %v1337
        %1339 = vmatmul.bf16.gmra.mxu0 %v1278
        %v1340 = vpop.f32.mrf.mxu0
        %v1341 = vadd.f32 0.0, %v1340
        %v1342 = vpop.f32.mrf.mxu0
        %v1343 = vadd.f32 0.0, %v1342
        %1344 = vmatmul.bf16.gmra.mxu0 %v1281
        %v1345 = vpop.f32.mrf.mxu0
        %v1346 = vadd.f32 0.0, %v1345
        %v1347 = vpop.f32.mrf.mxu0
        %v1348 = vadd.f32 0.0, %v1347
        %1349 = vmatmul.bf16.gmra.mxu0 %v1284
        %v1350 = vpop.f32.mrf.mxu0
        %v1351 = vadd.f32 0.0, %v1350
        %v1352 = vpop.f32.mrf.mxu0
        %v1353 = vadd.f32 0.0, %v1352
        %1354 = vmatmul.bf16.gmra.mxu0 %v1287
        %v1355 = vpop.f32.mrf.mxu0
        %v1356 = vadd.f32 0.0, %v1355
        %v1357 = vpop.f32.mrf.mxu0
        %v1358 = vadd.f32 0.0, %v1357
        %1359 = vmatmul.bf16.gmra.mxu0 %v1290
        %v1360 = vpop.f32.mrf.mxu0
        %v1361 = vadd.f32 0.0, %v1360
        %v1362 = vpop.f32.mrf.mxu0
        %v1363 = vadd.f32 0.0, %v1362
        %1364 = vmatmul.bf16.gmra.mxu0 %v1293
        %v1365 = vpop.f32.mrf.mxu0
        %v1366 = vadd.f32 0.0, %v1365
        %v1367 = vpop.f32.mrf.mxu0
        %v1368 = vadd.f32 0.0, %v1367
        %1369 = vmatmul.bf16.gmra.mxu0 %v1296
        %v1370 = vpop.f32.mrf.mxu0
        %v1371 = vadd.f32 0.0, %v1370
        %v1372 = vpop.f32.mrf.mxu0
        %v1373 = vadd.f32 0.0, %v1372
        %1374 = vmatmul.bf16.gmra.mxu0 %v1299
        %v1375 = vpop.f32.mrf.mxu0
        %v1376 = vadd.f32 0.0, %v1375
        %v1377 = vpop.f32.mrf.mxu0
        %v1378 = vadd.f32 0.0, %v1377
        %1379 = vmatmul.bf16.gmra.mxu0 %v1302
        %v1380 = vpop.f32.mrf.mxu0
        %v1381 = vadd.f32 0.0, %v1380
        %v1382 = vpop.f32.mrf.mxu0
        %v1383 = vadd.f32 0.0, %v1382
        %1384 = vmatmul.bf16.gmra.mxu0 %v1305
        %v1385 = vpop.f32.mrf.mxu0
        %v1386 = vadd.f32 0.0, %v1385
        %v1387 = vpop.f32.mrf.mxu0
        %v1388 = vadd.f32 0.0, %v1387
        %1389 = vmatmul.bf16.gmra.mxu0 %v1308
        %v1390 = vpop.f32.mrf.mxu0
        %v1391 = vadd.f32 0.0, %v1390
        %v1392 = vpop.f32.mrf.mxu0
        %v1393 = vadd.f32 0.0, %v1392
        %1394 = vmatmul.bf16.gmra.mxu0 %v1311
        %v1395 = vpop.f32.mrf.mxu0
        %v1396 = vadd.f32 0.0, %v1395
        %v1397 = vpop.f32.mrf.mxu0
        %v1398 = vadd.f32 0.0, %v1397
        %1399 = vmatmul.bf16.gmra.mxu0 %v1314
        %v1400 = vpop.f32.mrf.mxu0
        %v1401 = vadd.f32 0.0, %v1400
        %v1402 = vpop.f32.mrf.mxu0
        %v1403 = vadd.f32 0.0, %v1402
        %1404 = vmatmul.bf16.gmra.mxu0 %v1317
        %v1405 = vpop.f32.mrf.mxu0
        %v1406 = vadd.f32 0.0, %v1405
        %v1407 = vpop.f32.mrf.mxu0
        %v1408 = vadd.f32 0.0, %v1407
        %1409 = vmatmul.bf16.gmra.mxu0 %v1320
        %v1410 = vpop.f32.mrf.mxu0
        %v1411 = vadd.f32 0.0, %v1410
        %v1412 = vpop.f32.mrf.mxu0
        %v1413 = vadd.f32 0.0, %v1412
        %1414 = vdwg.mxu0
        %v1415 = vmul.f32 %v821, %v1336
        %v1416 = vmul.f32 %v822, %v1338
        %v1417 = vmul.f32 %v823, %v1341
        %v1418 = vmul.f32 %v824, %v1343
        %v1419 = vmul.f32 %v825, %v1346
        %v1420 = vmul.f32 %v826, %v1348
        %v1421 = vmul.f32 %v827, %v1351
        %v1422 = vmul.f32 %v828, %v1353
        %v1423 = vmul.f32 %v829, %v1356
        %v1424 = vmul.f32 %v830, %v1358
        %v1425 = vmul.f32 %v831, %v1361
        %v1426 = vmul.f32 %v832, %v1363
        %v1427 = vmul.f32 %v833, %v1366
        %v1428 = vmul.f32 %v834, %v1368
        %v1429 = vmul.f32 %v835, %v1371
        %v1430 = vmul.f32 %v836, %v1373
        %v1431 = vmul.f32 %v837, %v1376
        %v1432 = vmul.f32 %v838, %v1378
        %v1433 = vmul.f32 %v839, %v1381
        %v1434 = vmul.f32 %v840, %v1383
        %v1435 = vmul.f32 %v841, %v1386
        %v1436 = vmul.f32 %v842, %v1388
        %v1437 = vmul.f32 %v843, %v1391
        %v1438 = vmul.f32 %v844, %v1393
        %v1439 = vmul.f32 %v845, %v1396
        %v1440 = vmul.f32 %v846, %v1398
        %v1441 = vmul.f32 %v847, %v1401
        %v1442 = vmul.f32 %v848, %v1403
        %v1443 = vmul.f32 %v849, %v1406
        %v1444 = vmul.f32 %v850, %v1408
        %v1445 = vmul.f32 %v851, %v1411
        %v1446 = vmul.f32 %v852, %v1413
        %1447 = vadd.xlane.f32.xlu0 %v1415
        %v1448 = vpop.xlane.xlu0 %1447
        %1449 = vadd.xlane.f32.xlu0 %v1416
        %v1450 = vpop.xlane.xlu0 %1449
        %1451 = vadd.xlane.f32.xlu0 %v1417
        %v1452 = vpop.xlane.xlu0 %1451
        %1453 = vadd.xlane.f32.xlu0 %v1418
        %v1454 = vpop.xlane.xlu0 %1453
        %1455 = vadd.xlane.f32.xlu0 %v1419
        %v1456 = vpop.xlane.xlu0 %1455
        %1457 = vadd.xlane.f32.xlu0 %v1420
        %v1458 = vpop.xlane.xlu0 %1457
        %1459 = vadd.xlane.f32.xlu0 %v1421
        %v1460 = vpop.xlane.xlu0 %1459
        %1461 = vadd.xlane.f32.xlu0 %v1422
        %v1462 = vpop.xlane.xlu0 %1461
        %1463 = vadd.xlane.f32.xlu0 %v1423
        %v1464 = vpop.xlane.xlu0 %1463
        %1465 = vadd.xlane.f32.xlu0 %v1424
        %v1466 = vpop.xlane.xlu0 %1465
        %1467 = vadd.xlane.f32.xlu0 %v1425
        %v1468 = vpop.xlane.xlu0 %1467
        %1469 = vadd.xlane.f32.xlu0 %v1426
        %v1470 = vpop.xlane.xlu0 %1469
        %1471 = vadd.xlane.f32.xlu0 %v1427
        %v1472 = vpop.xlane.xlu0 %1471
        %1473 = vadd.xlane.f32.xlu0 %v1428
        %v1474 = vpop.xlane.xlu0 %1473
        %1475 = vadd.xlane.f32.xlu0 %v1429
        %v1476 = vpop.xlane.xlu0 %1475
        %1477 = vadd.xlane.f32.xlu0 %v1430
        %v1478 = vpop.xlane.xlu0 %1477
        %1479 = vadd.xlane.f32.xlu0 %v1431
        %v1480 = vpop.xlane.xlu0 %1479
        %1481 = vadd.xlane.f32.xlu0 %v1432
        %v1482 = vpop.xlane.xlu0 %1481
        %1483 = vadd.xlane.f32.xlu0 %v1433
        %v1484 = vpop.xlane.xlu0 %1483
        %1485 = vadd.xlane.f32.xlu0 %v1434
        %v1486 = vpop.xlane.xlu0 %1485
        %1487 = vadd.xlane.f32.xlu0 %v1435
        %v1488 = vpop.xlane.xlu0 %1487
        %1489 = vadd.xlane.f32.xlu0 %v1436
        %v1490 = vpop.xlane.xlu0 %1489
        %1491 = vadd.xlane.f32.xlu0 %v1437
        %v1492 = vpop.xlane.xlu0 %1491
        %1493 = vadd.xlane.f32.xlu0 %v1438
        %v1494 = vpop.xlane.xlu0 %1493
        %1495 = vadd.xlane.f32.xlu0 %v1439
        %v1496 = vpop.xlane.xlu0 %1495
        %1497 = vadd.xlane.f32.xlu0 %v1440
        %v1498 = vpop.xlane.xlu0 %1497
        %1499 = vadd.xlane.f32.xlu0 %v1441
        %v1500 = vpop.xlane.xlu0 %1499
        %1501 = vadd.xlane.f32.xlu0 %v1442
        %v1502 = vpop.xlane.xlu0 %1501
        %1503 = vadd.xlane.f32.xlu0 %v1443
        %v1504 = vpop.xlane.xlu0 %1503
        %1505 = vadd.xlane.f32.xlu0 %v1444
        %v1506 = vpop.xlane.xlu0 %1505
        %1507 = vadd.xlane.f32.xlu0 %v1445
        %v1508 = vpop.xlane.xlu0 %1507
        %1509 = vadd.xlane.f32.xlu0 %v1446
        %v1510 = vpop.xlane.xlu0 %1509
        %v1511 = vxor.u32 %v1448, 2147483648
        %v1512 = vxor.u32 %v1450, 2147483648
        %v1513 = vxor.u32 %v1452, 2147483648
        %v1514 = vxor.u32 %v1454, 2147483648
        %v1515 = vxor.u32 %v1456, 2147483648
        %v1516 = vxor.u32 %v1458, 2147483648
        %v1517 = vxor.u32 %v1460, 2147483648
        %v1518 = vxor.u32 %v1462, 2147483648
        %v1519 = vxor.u32 %v1464, 2147483648
        %v1520 = vxor.u32 %v1466, 2147483648
        %v1521 = vxor.u32 %v1468, 2147483648
        %v1522 = vxor.u32 %v1470, 2147483648
        %v1523 = vxor.u32 %v1472, 2147483648
        %v1524 = vxor.u32 %v1474, 2147483648
        %v1525 = vxor.u32 %v1476, 2147483648
        %v1526 = vxor.u32 %v1478, 2147483648
        %v1527 = vxor.u32 %v1480, 2147483648
        %v1528 = vxor.u32 %v1482, 2147483648
        %v1529 = vxor.u32 %v1484, 2147483648
        %v1530 = vxor.u32 %v1486, 2147483648
        %v1531 = vxor.u32 %v1488, 2147483648
        %v1532 = vxor.u32 %v1490, 2147483648
        %v1533 = vxor.u32 %v1492, 2147483648
        %v1534 = vxor.u32 %v1494, 2147483648
        %v1535 = vxor.u32 %v1496, 2147483648
        %v1536 = vxor.u32 %v1498, 2147483648
        %v1537 = vxor.u32 %v1500, 2147483648
        %v1538 = vxor.u32 %v1502, 2147483648
        %v1539 = vxor.u32 %v1504, 2147483648
        %v1540 = vxor.u32 %v1506, 2147483648
        %v1541 = vxor.u32 %v1508, 2147483648
        %v1542 = vxor.u32 %v1510, 2147483648
        %v1543 = vmul.f32 %v1511, 1.442695
        %v1544 = vpow.pop %v1543
        %v1545 = vmul.f32 %v1512, 1.442695
        %v1546 = vpow.pop %v1545
        %v1547 = vmul.f32 %v1513, 1.442695
        %v1548 = vpow.pop %v1547
        %v1549 = vmul.f32 %v1514, 1.442695
        %v1550 = vpow.pop %v1549
        %v1551 = vmul.f32 %v1515, 1.442695
        %v1552 = vpow.pop %v1551
        %v1553 = vmul.f32 %v1516, 1.442695
        %v1554 = vpow.pop %v1553
        %v1555 = vmul.f32 %v1517, 1.442695
        %v1556 = vpow.pop %v1555
        %v1557 = vmul.f32 %v1518, 1.442695
        %v1558 = vpow.pop %v1557
        %v1559 = vmul.f32 %v1519, 1.442695
        %v1560 = vpow.pop %v1559
        %v1561 = vmul.f32 %v1520, 1.442695
        %v1562 = vpow.pop %v1561
        %v1563 = vmul.f32 %v1521, 1.442695
        %v1564 = vpow.pop %v1563
        %v1565 = vmul.f32 %v1522, 1.442695
        %v1566 = vpow.pop %v1565
        %v1567 = vmul.f32 %v1523, 1.442695
        %v1568 = vpow.pop %v1567
        %v1569 = vmul.f32 %v1524, 1.442695
        %v1570 = vpow.pop %v1569
        %v1571 = vmul.f32 %v1525, 1.442695
        %v1572 = vpow.pop %v1571
        %v1573 = vmul.f32 %v1526, 1.442695
        %v1574 = vpow.pop %v1573
        %v1575 = vmul.f32 %v1527, 1.442695
        %v1576 = vpow.pop %v1575
        %v1577 = vmul.f32 %v1528, 1.442695
        %v1578 = vpow.pop %v1577
        %v1579 = vmul.f32 %v1529, 1.442695
        %v1580 = vpow.pop %v1579
        %v1581 = vmul.f32 %v1530, 1.442695
        %v1582 = vpow.pop %v1581
        %v1583 = vmul.f32 %v1531, 1.442695
        %v1584 = vpow.pop %v1583
        %v1585 = vmul.f32 %v1532, 1.442695
        %v1586 = vpow.pop %v1585
        %v1587 = vmul.f32 %v1533, 1.442695
        %v1588 = vpow.pop %v1587
        %v1589 = vmul.f32 %v1534, 1.442695
        %v1590 = vpow.pop %v1589
        %v1591 = vmul.f32 %v1535, 1.442695
        %v1592 = vpow.pop %v1591
        %v1593 = vmul.f32 %v1536, 1.442695
        %v1594 = vpow.pop %v1593
        %v1595 = vmul.f32 %v1537, 1.442695
        %v1596 = vpow.pop %v1595
        %v1597 = vmul.f32 %v1538, 1.442695
        %v1598 = vpow.pop %v1597
        %v1599 = vmul.f32 %v1539, 1.442695
        %v1600 = vpow.pop %v1599
        %v1601 = vmul.f32 %v1540, 1.442695
        %v1602 = vpow.pop %v1601
        %v1603 = vmul.f32 %v1541, 1.442695
        %v1604 = vpow.pop %v1603
        %v1605 = vmul.f32 %v1542, 1.442695
        %v1606 = vpow.pop %v1605
        %v1607 = vadd.f32 %v1544, 1.0
        %v1608 = vadd.f32 %v1546, 1.0
        %v1609 = vadd.f32 %v1548, 1.0
        %v1610 = vadd.f32 %v1550, 1.0
        %v1611 = vadd.f32 %v1552, 1.0
        %v1612 = vadd.f32 %v1554, 1.0
        %v1613 = vadd.f32 %v1556, 1.0
        %v1614 = vadd.f32 %v1558, 1.0
        %v1615 = vadd.f32 %v1560, 1.0
        %v1616 = vadd.f32 %v1562, 1.0
        %v1617 = vadd.f32 %v1564, 1.0
        %v1618 = vadd.f32 %v1566, 1.0
        %v1619 = vadd.f32 %v1568, 1.0
        %v1620 = vadd.f32 %v1570, 1.0
        %v1621 = vadd.f32 %v1572, 1.0
        %v1622 = vadd.f32 %v1574, 1.0
        %v1623 = vadd.f32 %v1576, 1.0
        %v1624 = vadd.f32 %v1578, 1.0
        %v1625 = vadd.f32 %v1580, 1.0
        %v1626 = vadd.f32 %v1582, 1.0
        %v1627 = vadd.f32 %v1584, 1.0
        %v1628 = vadd.f32 %v1586, 1.0
        %v1629 = vadd.f32 %v1588, 1.0
        %v1630 = vadd.f32 %v1590, 1.0
        %v1631 = vadd.f32 %v1592, 1.0
        %v1632 = vadd.f32 %v1594, 1.0
        %v1633 = vadd.f32 %v1596, 1.0
        %v1634 = vadd.f32 %v1598, 1.0
        %v1635 = vadd.f32 %v1600, 1.0
        %v1636 = vadd.f32 %v1602, 1.0
        %v1637 = vadd.f32 %v1604, 1.0
        %v1638 = vadd.f32 %v1606, 1.0
        %v1639 = vrcp.pop %v1607
        %v1640 = vmul.f32 %v1607, %v1639
        %v1641 = vsub.f32 1.0, %v1640
        %v1642 = vmul.f32 %v1639, %v1641
        %v1643 = vadd.f32 %v1639, %v1642
        %vm1644 = vweird.f32 %v1607
        %vm1645 = vweird.f32 %v1639
        %vm1646 = vmor %vm1644, %vm1645
        %v1647 = vsel %vm1646, %v1639, %v1643
        %v1648 = vand.u32 2147483647, %v1607
        %vm1649 = vcmp.eq.f32.partialorder %v1648, 8.507059e+37
        %v1650 = vand.u32 %v1607, 2147483648
        %v1651 = vor.u32 1.1754944e-38, %v1650
        %v1652 = vsel %vm1649, %v1651, %v1647
        %v1653 = vmul.f32 1.0, %v1652
        %v1654 = vrcp.pop %v1608
        %v1655 = vmul.f32 %v1608, %v1654
        %v1656 = vsub.f32 1.0, %v1655
        %v1657 = vmul.f32 %v1654, %v1656
        %v1658 = vadd.f32 %v1654, %v1657
        %vm1659 = vweird.f32 %v1608
        %vm1660 = vweird.f32 %v1654
        %vm1661 = vmor %vm1659, %vm1660
        %v1662 = vsel %vm1661, %v1654, %v1658
        %v1663 = vand.u32 2147483647, %v1608
        %vm1664 = vcmp.eq.f32.partialorder %v1663, 8.507059e+37
        %v1665 = vand.u32 %v1608, 2147483648
        %v1666 = vor.u32 1.1754944e-38, %v1665
        %v1667 = vsel %vm1664, %v1666, %v1662
        %v1668 = vmul.f32 1.0, %v1667
        %v1669 = vrcp.pop %v1609
        %v1670 = vmul.f32 %v1609, %v1669
        %v1671 = vsub.f32 1.0, %v1670
        %v1672 = vmul.f32 %v1669, %v1671
        %v1673 = vadd.f32 %v1669, %v1672
        %vm1674 = vweird.f32 %v1609
        %vm1675 = vweird.f32 %v1669
        %vm1676 = vmor %vm1674, %vm1675
        %v1677 = vsel %vm1676, %v1669, %v1673
        %v1678 = vand.u32 2147483647, %v1609
        %vm1679 = vcmp.eq.f32.partialorder %v1678, 8.507059e+37
        %v1680 = vand.u32 %v1609, 2147483648
        %v1681 = vor.u32 1.1754944e-38, %v1680
        %v1682 = vsel %vm1679, %v1681, %v1677
        %v1683 = vmul.f32 1.0, %v1682
        %v1684 = vrcp.pop %v1610
        %v1685 = vmul.f32 %v1610, %v1684
        %v1686 = vsub.f32 1.0, %v1685
        %v1687 = vmul.f32 %v1684, %v1686
        %v1688 = vadd.f32 %v1684, %v1687
        %vm1689 = vweird.f32 %v1610
        %vm1690 = vweird.f32 %v1684
        %vm1691 = vmor %vm1689, %vm1690
        %v1692 = vsel %vm1691, %v1684, %v1688
        %v1693 = vand.u32 2147483647, %v1610
        %vm1694 = vcmp.eq.f32.partialorder %v1693, 8.507059e+37
        %v1695 = vand.u32 %v1610, 2147483648
        %v1696 = vor.u32 1.1754944e-38, %v1695
        %v1697 = vsel %vm1694, %v1696, %v1692
        %v1698 = vmul.f32 1.0, %v1697
        %v1699 = vrcp.pop %v1611
        %v1700 = vmul.f32 %v1611, %v1699
        %v1701 = vsub.f32 1.0, %v1700
        %v1702 = vmul.f32 %v1699, %v1701
        %v1703 = vadd.f32 %v1699, %v1702
        %vm1704 = vweird.f32 %v1611
        %vm1705 = vweird.f32 %v1699
        %vm1706 = vmor %vm1704, %vm1705
        %v1707 = vsel %vm1706, %v1699, %v1703
        %v1708 = vand.u32 2147483647, %v1611
        %vm1709 = vcmp.eq.f32.partialorder %v1708, 8.507059e+37
        %v1710 = vand.u32 %v1611, 2147483648
        %v1711 = vor.u32 1.1754944e-38, %v1710
        %v1712 = vsel %vm1709, %v1711, %v1707
        %v1713 = vmul.f32 1.0, %v1712
        %v1714 = vrcp.pop %v1612
        %v1715 = vmul.f32 %v1612, %v1714
        %v1716 = vsub.f32 1.0, %v1715
        %v1717 = vmul.f32 %v1714, %v1716
        %v1718 = vadd.f32 %v1714, %v1717
        %vm1719 = vweird.f32 %v1612
        %vm1720 = vweird.f32 %v1714
        %vm1721 = vmor %vm1719, %vm1720
        %v1722 = vsel %vm1721, %v1714, %v1718
        %v1723 = vand.u32 2147483647, %v1612
        %vm1724 = vcmp.eq.f32.partialorder %v1723, 8.507059e+37
        %v1725 = vand.u32 %v1612, 2147483648
        %v1726 = vor.u32 1.1754944e-38, %v1725
        %v1727 = vsel %vm1724, %v1726, %v1722
        %v1728 = vmul.f32 1.0, %v1727
        %v1729 = vrcp.pop %v1613
        %v1730 = vmul.f32 %v1613, %v1729
        %v1731 = vsub.f32 1.0, %v1730
        %v1732 = vmul.f32 %v1729, %v1731
        %v1733 = vadd.f32 %v1729, %v1732
        %vm1734 = vweird.f32 %v1613
        %vm1735 = vweird.f32 %v1729
        %vm1736 = vmor %vm1734, %vm1735
        %v1737 = vsel %vm1736, %v1729, %v1733
        %v1738 = vand.u32 2147483647, %v1613
        %vm1739 = vcmp.eq.f32.partialorder %v1738, 8.507059e+37
        %v1740 = vand.u32 %v1613, 2147483648
        %v1741 = vor.u32 1.1754944e-38, %v1740
        %v1742 = vsel %vm1739, %v1741, %v1737
        %v1743 = vmul.f32 1.0, %v1742
        %v1744 = vrcp.pop %v1614
        %v1745 = vmul.f32 %v1614, %v1744
        %v1746 = vsub.f32 1.0, %v1745
        %v1747 = vmul.f32 %v1744, %v1746
        %v1748 = vadd.f32 %v1744, %v1747
        %vm1749 = vweird.f32 %v1614
        %vm1750 = vweird.f32 %v1744
        %vm1751 = vmor %vm1749, %vm1750
        %v1752 = vsel %vm1751, %v1744, %v1748
        %v1753 = vand.u32 2147483647, %v1614
        %vm1754 = vcmp.eq.f32.partialorder %v1753, 8.507059e+37
        %v1755 = vand.u32 %v1614, 2147483648
        %v1756 = vor.u32 1.1754944e-38, %v1755
        %v1757 = vsel %vm1754, %v1756, %v1752
        %v1758 = vmul.f32 1.0, %v1757
        %v1759 = vrcp.pop %v1615
        %v1760 = vmul.f32 %v1615, %v1759
        %v1761 = vsub.f32 1.0, %v1760
        %v1762 = vmul.f32 %v1759, %v1761
        %v1763 = vadd.f32 %v1759, %v1762
        %vm1764 = vweird.f32 %v1615
        %vm1765 = vweird.f32 %v1759
        %vm1766 = vmor %vm1764, %vm1765
        %v1767 = vsel %vm1766, %v1759, %v1763
        %v1768 = vand.u32 2147483647, %v1615
        %vm1769 = vcmp.eq.f32.partialorder %v1768, 8.507059e+37
        %v1770 = vand.u32 %v1615, 2147483648
        %v1771 = vor.u32 1.1754944e-38, %v1770
        %v1772 = vsel %vm1769, %v1771, %v1767
        %v1773 = vmul.f32 1.0, %v1772
        %v1774 = vrcp.pop %v1616
        %v1775 = vmul.f32 %v1616, %v1774
        %v1776 = vsub.f32 1.0, %v1775
        %v1777 = vmul.f32 %v1774, %v1776
        %v1778 = vadd.f32 %v1774, %v1777
        %vm1779 = vweird.f32 %v1616
        %vm1780 = vweird.f32 %v1774
        %vm1781 = vmor %vm1779, %vm1780
        %v1782 = vsel %vm1781, %v1774, %v1778
        %v1783 = vand.u32 2147483647, %v1616
        %vm1784 = vcmp.eq.f32.partialorder %v1783, 8.507059e+37
        %v1785 = vand.u32 %v1616, 2147483648
        %v1786 = vor.u32 1.1754944e-38, %v1785
        %v1787 = vsel %vm1784, %v1786, %v1782
        %v1788 = vmul.f32 1.0, %v1787
        %v1789 = vrcp.pop %v1617
        %v1790 = vmul.f32 %v1617, %v1789
        %v1791 = vsub.f32 1.0, %v1790
        %v1792 = vmul.f32 %v1789, %v1791
        %v1793 = vadd.f32 %v1789, %v1792
        %vm1794 = vweird.f32 %v1617
        %vm1795 = vweird.f32 %v1789
        %vm1796 = vmor %vm1794, %vm1795
        %v1797 = vsel %vm1796, %v1789, %v1793
        %v1798 = vand.u32 2147483647, %v1617
        %vm1799 = vcmp.eq.f32.partialorder %v1798, 8.507059e+37
        %v1800 = vand.u32 %v1617, 2147483648
        %v1801 = vor.u32 1.1754944e-38, %v1800
        %v1802 = vsel %vm1799, %v1801, %v1797
        %v1803 = vmul.f32 1.0, %v1802
        %v1804 = vrcp.pop %v1618
        %v1805 = vmul.f32 %v1618, %v1804
        %v1806 = vsub.f32 1.0, %v1805
        %v1807 = vmul.f32 %v1804, %v1806
        %v1808 = vadd.f32 %v1804, %v1807
        %vm1809 = vweird.f32 %v1618
        %vm1810 = vweird.f32 %v1804
        %vm1811 = vmor %vm1809, %vm1810
        %v1812 = vsel %vm1811, %v1804, %v1808
        %v1813 = vand.u32 2147483647, %v1618
        %vm1814 = vcmp.eq.f32.partialorder %v1813, 8.507059e+37
        %v1815 = vand.u32 %v1618, 2147483648
        %v1816 = vor.u32 1.1754944e-38, %v1815
        %v1817 = vsel %vm1814, %v1816, %v1812
        %v1818 = vmul.f32 1.0, %v1817
        %v1819 = vrcp.pop %v1619
        %v1820 = vmul.f32 %v1619, %v1819
        %v1821 = vsub.f32 1.0, %v1820
        %v1822 = vmul.f32 %v1819, %v1821
        %v1823 = vadd.f32 %v1819, %v1822
        %vm1824 = vweird.f32 %v1619
        %vm1825 = vweird.f32 %v1819
        %vm1826 = vmor %vm1824, %vm1825
        %v1827 = vsel %vm1826, %v1819, %v1823
        %v1828 = vand.u32 2147483647, %v1619
        %vm1829 = vcmp.eq.f32.partialorder %v1828, 8.507059e+37
        %v1830 = vand.u32 %v1619, 2147483648
        %v1831 = vor.u32 1.1754944e-38, %v1830
        %v1832 = vsel %vm1829, %v1831, %v1827
        %v1833 = vmul.f32 1.0, %v1832
        %v1834 = vrcp.pop %v1620
        %v1835 = vmul.f32 %v1620, %v1834
        %v1836 = vsub.f32 1.0, %v1835
        %v1837 = vmul.f32 %v1834, %v1836
        %v1838 = vadd.f32 %v1834, %v1837
        %vm1839 = vweird.f32 %v1620
        %vm1840 = vweird.f32 %v1834
        %vm1841 = vmor %vm1839, %vm1840
        %v1842 = vsel %vm1841, %v1834, %v1838
        %v1843 = vand.u32 2147483647, %v1620
        %vm1844 = vcmp.eq.f32.partialorder %v1843, 8.507059e+37
        %v1845 = vand.u32 %v1620, 2147483648
        %v1846 = vor.u32 1.1754944e-38, %v1845
        %v1847 = vsel %vm1844, %v1846, %v1842
        %v1848 = vmul.f32 1.0, %v1847
        %v1849 = vrcp.pop %v1621
        %v1850 = vmul.f32 %v1621, %v1849
        %v1851 = vsub.f32 1.0, %v1850
        %v1852 = vmul.f32 %v1849, %v1851
        %v1853 = vadd.f32 %v1849, %v1852
        %vm1854 = vweird.f32 %v1621
        %vm1855 = vweird.f32 %v1849
        %vm1856 = vmor %vm1854, %vm1855
        %v1857 = vsel %vm1856, %v1849, %v1853
        %v1858 = vand.u32 2147483647, %v1621
        %vm1859 = vcmp.eq.f32.partialorder %v1858, 8.507059e+37
        %v1860 = vand.u32 %v1621, 2147483648
        %v1861 = vor.u32 1.1754944e-38, %v1860
        %v1862 = vsel %vm1859, %v1861, %v1857
        %v1863 = vmul.f32 1.0, %v1862
        %v1864 = vrcp.pop %v1622
        %v1865 = vmul.f32 %v1622, %v1864
        %v1866 = vsub.f32 1.0, %v1865
        %v1867 = vmul.f32 %v1864, %v1866
        %v1868 = vadd.f32 %v1864, %v1867
        %vm1869 = vweird.f32 %v1622
        %vm1870 = vweird.f32 %v1864
        %vm1871 = vmor %vm1869, %vm1870
        %v1872 = vsel %vm1871, %v1864, %v1868
        %v1873 = vand.u32 2147483647, %v1622
        %vm1874 = vcmp.eq.f32.partialorder %v1873, 8.507059e+37
        %v1875 = vand.u32 %v1622, 2147483648
        %v1876 = vor.u32 1.1754944e-38, %v1875
        %v1877 = vsel %vm1874, %v1876, %v1872
        %v1878 = vmul.f32 1.0, %v1877
        %v1879 = vrcp.pop %v1623
        %v1880 = vmul.f32 %v1623, %v1879
        %v1881 = vsub.f32 1.0, %v1880
        %v1882 = vmul.f32 %v1879, %v1881
        %v1883 = vadd.f32 %v1879, %v1882
        %vm1884 = vweird.f32 %v1623
        %vm1885 = vweird.f32 %v1879
        %vm1886 = vmor %vm1884, %vm1885
        %v1887 = vsel %vm1886, %v1879, %v1883
        %v1888 = vand.u32 2147483647, %v1623
        %vm1889 = vcmp.eq.f32.partialorder %v1888, 8.507059e+37
        %v1890 = vand.u32 %v1623, 2147483648
        %v1891 = vor.u32 1.1754944e-38, %v1890
        %v1892 = vsel %vm1889, %v1891, %v1887
        %v1893 = vmul.f32 1.0, %v1892
        %v1894 = vrcp.pop %v1624
        %v1895 = vmul.f32 %v1624, %v1894
        %v1896 = vsub.f32 1.0, %v1895
        %v1897 = vmul.f32 %v1894, %v1896
        %v1898 = vadd.f32 %v1894, %v1897
        %vm1899 = vweird.f32 %v1624
        %vm1900 = vweird.f32 %v1894
        %vm1901 = vmor %vm1899, %vm1900
        %v1902 = vsel %vm1901, %v1894, %v1898
        %v1903 = vand.u32 2147483647, %v1624
        %vm1904 = vcmp.eq.f32.partialorder %v1903, 8.507059e+37
        %v1905 = vand.u32 %v1624, 2147483648
        %v1906 = vor.u32 1.1754944e-38, %v1905
        %v1907 = vsel %vm1904, %v1906, %v1902
        %v1908 = vmul.f32 1.0, %v1907
        %v1909 = vrcp.pop %v1625
        %v1910 = vmul.f32 %v1625, %v1909
        %v1911 = vsub.f32 1.0, %v1910
        %v1912 = vmul.f32 %v1909, %v1911
        %v1913 = vadd.f32 %v1909, %v1912
        %vm1914 = vweird.f32 %v1625
        %vm1915 = vweird.f32 %v1909
        %vm1916 = vmor %vm1914, %vm1915
        %v1917 = vsel %vm1916, %v1909, %v1913
        %v1918 = vand.u32 2147483647, %v1625
        %vm1919 = vcmp.eq.f32.partialorder %v1918, 8.507059e+37
        %v1920 = vand.u32 %v1625, 2147483648
        %v1921 = vor.u32 1.1754944e-38, %v1920
        %v1922 = vsel %vm1919, %v1921, %v1917
        %v1923 = vmul.f32 1.0, %v1922
        %v1924 = vrcp.pop %v1626
        %v1925 = vmul.f32 %v1626, %v1924
        %v1926 = vsub.f32 1.0, %v1925
        %v1927 = vmul.f32 %v1924, %v1926
        %v1928 = vadd.f32 %v1924, %v1927
        %vm1929 = vweird.f32 %v1626
        %vm1930 = vweird.f32 %v1924
        %vm1931 = vmor %vm1929, %vm1930
        %v1932 = vsel %vm1931, %v1924, %v1928
        %v1933 = vand.u32 2147483647, %v1626
        %vm1934 = vcmp.eq.f32.partialorder %v1933, 8.507059e+37
        %v1935 = vand.u32 %v1626, 2147483648
        %v1936 = vor.u32 1.1754944e-38, %v1935
        %v1937 = vsel %vm1934, %v1936, %v1932
        %v1938 = vmul.f32 1.0, %v1937
        %v1939 = vrcp.pop %v1627
        %v1940 = vmul.f32 %v1627, %v1939
        %v1941 = vsub.f32 1.0, %v1940
        %v1942 = vmul.f32 %v1939, %v1941
        %v1943 = vadd.f32 %v1939, %v1942
        %vm1944 = vweird.f32 %v1627
        %vm1945 = vweird.f32 %v1939
        %vm1946 = vmor %vm1944, %vm1945
        %v1947 = vsel %vm1946, %v1939, %v1943
        %v1948 = vand.u32 2147483647, %v1627
        %vm1949 = vcmp.eq.f32.partialorder %v1948, 8.507059e+37
        %v1950 = vand.u32 %v1627, 2147483648
        %v1951 = vor.u32 1.1754944e-38, %v1950
        %v1952 = vsel %vm1949, %v1951, %v1947
        %v1953 = vmul.f32 1.0, %v1952
        %v1954 = vrcp.pop %v1628
        %v1955 = vmul.f32 %v1628, %v1954
        %v1956 = vsub.f32 1.0, %v1955
        %v1957 = vmul.f32 %v1954, %v1956
        %v1958 = vadd.f32 %v1954, %v1957
        %vm1959 = vweird.f32 %v1628
        %vm1960 = vweird.f32 %v1954
        %vm1961 = vmor %vm1959, %vm1960
        %v1962 = vsel %vm1961, %v1954, %v1958
        %v1963 = vand.u32 2147483647, %v1628
        %vm1964 = vcmp.eq.f32.partialorder %v1963, 8.507059e+37
        %v1965 = vand.u32 %v1628, 2147483648
        %v1966 = vor.u32 1.1754944e-38, %v1965
        %v1967 = vsel %vm1964, %v1966, %v1962
        %v1968 = vmul.f32 1.0, %v1967
        %v1969 = vrcp.pop %v1629
        %v1970 = vmul.f32 %v1629, %v1969
        %v1971 = vsub.f32 1.0, %v1970
        %v1972 = vmul.f32 %v1969, %v1971
        %v1973 = vadd.f32 %v1969, %v1972
        %vm1974 = vweird.f32 %v1629
        %vm1975 = vweird.f32 %v1969
        %vm1976 = vmor %vm1974, %vm1975
        %v1977 = vsel %vm1976, %v1969, %v1973
        %v1978 = vand.u32 2147483647, %v1629
        %vm1979 = vcmp.eq.f32.partialorder %v1978, 8.507059e+37
        %v1980 = vand.u32 %v1629, 2147483648
        %v1981 = vor.u32 1.1754944e-38, %v1980
        %v1982 = vsel %vm1979, %v1981, %v1977
        %v1983 = vmul.f32 1.0, %v1982
        %v1984 = vrcp.pop %v1630
        %v1985 = vmul.f32 %v1630, %v1984
        %v1986 = vsub.f32 1.0, %v1985
        %v1987 = vmul.f32 %v1984, %v1986
        %v1988 = vadd.f32 %v1984, %v1987
        %vm1989 = vweird.f32 %v1630
        %vm1990 = vweird.f32 %v1984
        %vm1991 = vmor %vm1989, %vm1990
        %v1992 = vsel %vm1991, %v1984, %v1988
        %v1993 = vand.u32 2147483647, %v1630
        %vm1994 = vcmp.eq.f32.partialorder %v1993, 8.507059e+37
        %v1995 = vand.u32 %v1630, 2147483648
        %v1996 = vor.u32 1.1754944e-38, %v1995
        %v1997 = vsel %vm1994, %v1996, %v1992
        %v1998 = vmul.f32 1.0, %v1997
        %v1999 = vrcp.pop %v1631
        %v2000 = vmul.f32 %v1631, %v1999
        %v2001 = vsub.f32 1.0, %v2000
        %v2002 = vmul.f32 %v1999, %v2001
        %v2003 = vadd.f32 %v1999, %v2002
        %vm2004 = vweird.f32 %v1631
        %vm2005 = vweird.f32 %v1999
        %vm2006 = vmor %vm2004, %vm2005
        %v2007 = vsel %vm2006, %v1999, %v2003
        %v2008 = vand.u32 2147483647, %v1631
        %vm2009 = vcmp.eq.f32.partialorder %v2008, 8.507059e+37
        %v2010 = vand.u32 %v1631, 2147483648
        %v2011 = vor.u32 1.1754944e-38, %v2010
        %v2012 = vsel %vm2009, %v2011, %v2007
        %v2013 = vmul.f32 1.0, %v2012
        %v2014 = vrcp.pop %v1632
        %v2015 = vmul.f32 %v1632, %v2014
        %v2016 = vsub.f32 1.0, %v2015
        %v2017 = vmul.f32 %v2014, %v2016
        %v2018 = vadd.f32 %v2014, %v2017
        %vm2019 = vweird.f32 %v1632
        %vm2020 = vweird.f32 %v2014
        %vm2021 = vmor %vm2019, %vm2020
        %v2022 = vsel %vm2021, %v2014, %v2018
        %v2023 = vand.u32 2147483647, %v1632
        %vm2024 = vcmp.eq.f32.partialorder %v2023, 8.507059e+37
        %v2025 = vand.u32 %v1632, 2147483648
        %v2026 = vor.u32 1.1754944e-38, %v2025
        %v2027 = vsel %vm2024, %v2026, %v2022
        %v2028 = vmul.f32 1.0, %v2027
        %v2029 = vrcp.pop %v1633
        %v2030 = vmul.f32 %v1633, %v2029
        %v2031 = vsub.f32 1.0, %v2030
        %v2032 = vmul.f32 %v2029, %v2031
        %v2033 = vadd.f32 %v2029, %v2032
        %vm2034 = vweird.f32 %v1633
        %vm2035 = vweird.f32 %v2029
        %vm2036 = vmor %vm2034, %vm2035
        %v2037 = vsel %vm2036, %v2029, %v2033
        %v2038 = vand.u32 2147483647, %v1633
        %vm2039 = vcmp.eq.f32.partialorder %v2038, 8.507059e+37
        %v2040 = vand.u32 %v1633, 2147483648
        %v2041 = vor.u32 1.1754944e-38, %v2040
        %v2042 = vsel %vm2039, %v2041, %v2037
        %v2043 = vmul.f32 1.0, %v2042
        %v2044 = vrcp.pop %v1634
        %v2045 = vmul.f32 %v1634, %v2044
        %v2046 = vsub.f32 1.0, %v2045
        %v2047 = vmul.f32 %v2044, %v2046
        %v2048 = vadd.f32 %v2044, %v2047
        %vm2049 = vweird.f32 %v1634
        %vm2050 = vweird.f32 %v2044
        %vm2051 = vmor %vm2049, %vm2050
        %v2052 = vsel %vm2051, %v2044, %v2048
        %v2053 = vand.u32 2147483647, %v1634
        %vm2054 = vcmp.eq.f32.partialorder %v2053, 8.507059e+37
        %v2055 = vand.u32 %v1634, 2147483648
        %v2056 = vor.u32 1.1754944e-38, %v2055
        %v2057 = vsel %vm2054, %v2056, %v2052
        %v2058 = vmul.f32 1.0, %v2057
        %v2059 = vrcp.pop %v1635
        %v2060 = vmul.f32 %v1635, %v2059
        %v2061 = vsub.f32 1.0, %v2060
        %v2062 = vmul.f32 %v2059, %v2061
        %v2063 = vadd.f32 %v2059, %v2062
        %vm2064 = vweird.f32 %v1635
        %vm2065 = vweird.f32 %v2059
        %vm2066 = vmor %vm2064, %vm2065
        %v2067 = vsel %vm2066, %v2059, %v2063
        %v2068 = vand.u32 2147483647, %v1635
        %vm2069 = vcmp.eq.f32.partialorder %v2068, 8.507059e+37
        %v2070 = vand.u32 %v1635, 2147483648
        %v2071 = vor.u32 1.1754944e-38, %v2070
        %v2072 = vsel %vm2069, %v2071, %v2067
        %v2073 = vmul.f32 1.0, %v2072
        %v2074 = vrcp.pop %v1636
        %v2075 = vmul.f32 %v1636, %v2074
        %v2076 = vsub.f32 1.0, %v2075
        %v2077 = vmul.f32 %v2074, %v2076
        %v2078 = vadd.f32 %v2074, %v2077
        %vm2079 = vweird.f32 %v1636
        %vm2080 = vweird.f32 %v2074
        %vm2081 = vmor %vm2079, %vm2080
        %v2082 = vsel %vm2081, %v2074, %v2078
        %v2083 = vand.u32 2147483647, %v1636
        %vm2084 = vcmp.eq.f32.partialorder %v2083, 8.507059e+37
        %v2085 = vand.u32 %v1636, 2147483648
        %v2086 = vor.u32 1.1754944e-38, %v2085
        %v2087 = vsel %vm2084, %v2086, %v2082
        %v2088 = vmul.f32 1.0, %v2087
        %v2089 = vrcp.pop %v1637
        %v2090 = vmul.f32 %v1637, %v2089
        %v2091 = vsub.f32 1.0, %v2090
        %v2092 = vmul.f32 %v2089, %v2091
        %v2093 = vadd.f32 %v2089, %v2092
        %vm2094 = vweird.f32 %v1637
        %vm2095 = vweird.f32 %v2089
        %vm2096 = vmor %vm2094, %vm2095
        %v2097 = vsel %vm2096, %v2089, %v2093
        %v2098 = vand.u32 2147483647, %v1637
        %vm2099 = vcmp.eq.f32.partialorder %v2098, 8.507059e+37
        %v2100 = vand.u32 %v1637, 2147483648
        %v2101 = vor.u32 1.1754944e-38, %v2100
        %v2102 = vsel %vm2099, %v2101, %v2097
        %v2103 = vmul.f32 1.0, %v2102
        %v2104 = vrcp.pop %v1638
        %v2105 = vmul.f32 %v1638, %v2104
        %v2106 = vsub.f32 1.0, %v2105
        %v2107 = vmul.f32 %v2104, %v2106
        %v2108 = vadd.f32 %v2104, %v2107
        %vm2109 = vweird.f32 %v1638
        %vm2110 = vweird.f32 %v2104
        %vm2111 = vmor %vm2109, %vm2110
        %v2112 = vsel %vm2111, %v2104, %v2108
        %v2113 = vand.u32 2147483647, %v1638
        %vm2114 = vcmp.eq.f32.partialorder %v2113, 8.507059e+37
        %v2115 = vand.u32 %v1638, 2147483648
        %v2116 = vor.u32 1.1754944e-38, %v2115
        %v2117 = vsel %vm2114, %v2116, %v2112
        %v2118 = vmul.f32 1.0, %v2117
        %v2119 = vmul.f32 %v1653, %v821
        %v2120 = vmul.f32 %v1668, %v822
        %v2121 = vmul.f32 %v1683, %v823
        %v2122 = vmul.f32 %v1698, %v824
        %v2123 = vmul.f32 %v1713, %v825
        %v2124 = vmul.f32 %v1728, %v826
        %v2125 = vmul.f32 %v1743, %v827
        %v2126 = vmul.f32 %v1758, %v828
        %v2127 = vmul.f32 %v1773, %v829
        %v2128 = vmul.f32 %v1788, %v830
        %v2129 = vmul.f32 %v1803, %v831
        %v2130 = vmul.f32 %v1818, %v832
        %v2131 = vmul.f32 %v1833, %v833
        %v2132 = vmul.f32 %v1848, %v834
        %v2133 = vmul.f32 %v1863, %v835
        %v2134 = vmul.f32 %v1878, %v836
        %v2135 = vmul.f32 %v1893, %v837
        %v2136 = vmul.f32 %v1908, %v838
        %v2137 = vmul.f32 %v1923, %v839
        %v2138 = vmul.f32 %v1938, %v840
        %v2139 = vmul.f32 %v1953, %v841
        %v2140 = vmul.f32 %v1968, %v842
        %v2141 = vmul.f32 %v1983, %v843
        %v2142 = vmul.f32 %v1998, %v844
        %v2143 = vmul.f32 %v2013, %v845
        %v2144 = vmul.f32 %v2028, %v846
        %v2145 = vmul.f32 %v2043, %v847
        %v2146 = vmul.f32 %v2058, %v848
        %v2147 = vmul.f32 %v2073, %v849
        %v2148 = vmul.f32 %v2088, %v850
        %v2149 = vmul.f32 %v2103, %v851
        %v2150 = vmul.f32 %v2118, %v852
        %v2151 = vpack.c.bf16 %v2120, %v2119
        %v2152 = vpack.c.bf16 %v2122, %v2121
        %v2153 = vpack.c.bf16 %v2124, %v2123
        %v2154 = vpack.c.bf16 %v2126, %v2125
        %v2155 = vpack.c.bf16 %v2128, %v2127
        %v2156 = vpack.c.bf16 %v2130, %v2129
        %v2157 = vpack.c.bf16 %v2132, %v2131
        %v2158 = vpack.c.bf16 %v2134, %v2133
        %v2159 = vpack.c.bf16 %v2136, %v2135
        %v2160 = vpack.c.bf16 %v2138, %v2137
        %v2161 = vpack.c.bf16 %v2140, %v2139
        %v2162 = vpack.c.bf16 %v2142, %v2141
        %v2163 = vpack.c.bf16 %v2144, %v2143
        %v2164 = vpack.c.bf16 %v2146, %v2145
        %v2165 = vpack.c.bf16 %v2148, %v2147
        %v2166 = vpack.c.bf16 %v2150, %v2149
        %v2167 = vld [vmem:[%s8] sm:$0xff]
        %2168 = vmatpush.bf16.msra.mxu0 %v2158
        %2169 = vmatpush.bf16.msra.mxu0 %v2157
        %2170 = vmatpush.bf16.msra.mxu0 %v2156
        %2171 = vmatpush.bf16.msra.mxu0 %v2155
        %2172 = vmatpush.bf16.msra.mxu0 %v2154
        %2173 = vmatpush.bf16.msra.mxu0 %v2153
        %2174 = vmatpush.bf16.msra.mxu0 %v2152
        %2175 = vmatpush.bf16.msra.mxu0 %v2151
        %2176 = vmatmul.bf16.gmra.mxu0 %v880
        %v2177 = vpop.f32.mrf.mxu0
        %v2178 = vadd.f32 0.0, %v2177
        %v2179 = vpop.f32.mrf.mxu0
        %2180 = vdwg.mxu0
        %2181 = vmatpush.bf16.msra.mxu0 %v2166
        %2182 = vmatpush.bf16.msra.mxu0 %v2165
        %2183 = vmatpush.bf16.msra.mxu0 %v2164
        %2184 = vmatpush.bf16.msra.mxu0 %v2163
        %2185 = vmatpush.bf16.msra.mxu0 %v2162
        %2186 = vmatpush.bf16.msra.mxu0 %v2161
        %2187 = vmatpush.bf16.msra.mxu0 %v2160
        %2188 = vmatpush.bf16.msra.mxu0 %v2159
        %2189 = vmatmul.bf16.gmra.mxu0 %v881
        %v2190 = vpop.f32.mrf.mxu0
        %v2191 = vadd.f32 %v2178, %v2190
        %v2192 = vpop.f32.mrf.mxu0
        %2193 = vdwg.mxu0
        %v2194 = vadd.f32 %v2167, %v2191
        %2195 = vst [vmem:[%s8] sm:$0xff] %v2194
      $region68: #{attention_module_forward.1} parent=51 // pred_fallthru
        _
      // Predicated region
      $region69: #{attention_module_forward.1} parent=51 // pred_check
        %p2196 = pneg %p227
      $region70: #{attention_module_forward.1} parent=51 // pred_check_branch
        %2198 = sbr.rel (%p2196) target = $region72
      $region71: #{attention_module_forward.1} parent=51 // pred_region
        _
      $region72: #{attention_module_forward.1} parent=51 // pred_fallthru
        _
      // Predicated region
      $region73: #{attention_module_forward.1} parent=51 // pred_check
        %p2199 = pneg %p227
      $region74: #{attention_module_forward.1} parent=51 // pred_check_branch
        %2201 = sbr.rel (%p2199) target = $region76
      $region75: #{attention_module_forward.1} parent=51 // pred_region
        _
      $region76: #{attention_module_forward.1} parent=51 // pred_fallthru
        _
    $region52: #{attention_module_forward.1} parent=5 // pred_fallthru
      _
    %p2202 = scmp.le.s32.totalorder 2, %s14
    // Predicated region
    $region77: #{attention_module_forward.1} parent=5 // pred_check
      %p2203 = pneg %p2202
    $region78: #{attention_module_forward.1} parent=5 // pred_check_branch
      %2205 = sbr.rel (%p2203) target = $region80
    $region79: #{attention_module_forward.1} parent=5 // pred_region
      %s2206 = ssub.s32 %s14, 2
    $region80: #{attention_module_forward.1} parent=5 // pred_fallthru
      _
  $region6: #{attention_module_forward.1} parent=0 // loop_footer
    %s18 = sadd.s32 1, %s14
  $region7: #{attention_module_forward.1} parent=0 // loop_footer_branch
    %13 = sbr.rel target = $region3
  $region8: #{attention_module_forward.1} parent=0 // loop_exit
    _

</llo_original>
